<compile_context>
chip_gen: v7x
topology: tpu7x:2x2x1
jax: 0.10.0
libtpu: 0.0.40
codegen_flags: <defaults>
</compile_context>

<pallas_src>
import math
from functools import partial

import jax
import jax.numpy as jnp
from jax import lax
from jax.experimental import pallas as pl
from jax.experimental.pallas import tpu as pltpu


# ----------------------------- hardware-aware config ------------------------------

def _detect_vmem_bytes():
    try:
        info = pltpu.get_tpu_info()
        for attr in ("vmem_capacity_bytes", "vmem_bytes", "vmem_size_bytes"):
            v = getattr(info, attr, None)
            if v:
                return int(v)
    except Exception:
        pass
    return 64 * 1024 * 1024   # conservative (v7x-sized) fallback


_VMEM_BYTES = _detect_vmem_bytes()
_BIG_VMEM = _VMEM_BYTES >= 100 * 1024 * 1024          # v5e/v6e: 128 MiB; v7x: 64 MiB
_VMEM_LIMIT = min(int(0.75 * _VMEM_BYTES), 96 * 1024 * 1024)


def _tile_and_pad(dim, cap, align):
    """Return (tile, padded_dim). If dim fits the cap, use the full dim (block == array dim,
    always legal). Otherwise use an aligned tile and pad the dim up to a multiple of it —
    never silently fall back to an untiled block."""
    if dim <= cap:
        return dim, dim
    tile = max(align, (cap // align) * align)
    padded = ((dim + tile - 1) // tile) * tile
    return tile, padded


# ----------------------------- Pallas kernels ------------------------------

def _matmul_bias_kernel(x_ref, w_ref, b_ref, o_ref, acc_ref):
    """Tiled  o = x @ w + b  with bf16 MXU operands and f32 accumulation."""
    @pl.when(pl.program_id(2) == 0)
    def _():
        acc_ref[...] = jnp.zeros_like(acc_ref)

    acc_ref[...] += jnp.dot(x_ref[...], w_ref[...], preferred_element_type=jnp.float32)

    @pl.when(pl.program_id(2) == pl.num_programs(2) - 1)
    def _():
        o_ref[...] = (acc_ref[...] + b_ref[...]).astype(o_ref.dtype)


def _linear_add_ln_kernel(x_ref, w_ref, b_ref, r_ref, g_ref, beta_ref, o_ref, *, eps):
    """o = LayerNorm(residual + x @ w + b)  (projection + add + one-pass LN fused)."""
    y = jnp.dot(x_ref[...], w_ref[...], preferred_element_type=jnp.float32) + b_ref[...]
    y = y + r_ref[...].astype(jnp.float32)
    n = y.shape[-1]
    s1 = jnp.sum(y, axis=-1, keepdims=True)
    s2 = jnp.sum(y * y, axis=-1, keepdims=True)
    mu = s1 / n
    var = jnp.maximum(s2 / n - mu * mu, 0.0)
    o_ref[...] = ((y - mu) * lax.rsqrt(var + eps) * g_ref[...]
                  + beta_ref[...]).astype(o_ref.dtype)


def _ffn_add_ln_kernel(x_ref, w1_ref, b1_ref, w2_ref, b2_ref, g_ref, beta_ref, o_ref,
                       acc_ref, *, eps):
    """o = LayerNorm(x + relu(x @ w1 + b1) @ w2 + b2), with the F (d_ffn) axis tiled:
    grid axis 1 iterates F tiles, accumulating into a f32 VMEM scratch."""
    f = pl.program_id(1)

    @pl.when(f == 0)
    def _():
        acc_ref[...] = jnp.zeros_like(acc_ref)

    h = jnp.dot(x_ref[...], w1_ref[...], preferred_element_type=jnp.float32) + b1_ref[...]
    h = jnp.maximum(h, 0.0)
    acc_ref[...] += jnp.dot(h.astype(jnp.bfloat16), w2_ref[...],
                            preferred_element_type=jnp.float32)

    @pl.when(f == pl.num_programs(1) - 1)
    def _():
        y = acc_ref[...] + b2_ref[...] + x_ref[...].astype(jnp.float32)
        n = y.shape[-1]
        s1 = jnp.sum(y, axis=-1, keepdims=True)
        s2 = jnp.sum(y * y, axis=-1, keepdims=True)
        mu = s1 / n
        var = jnp.maximum(s2 / n - mu * mu, 0.0)
        o_ref[...] = ((y - mu) * lax.rsqrt(var + eps) * g_ref[...]
                      + beta_ref[...]).astype(o_ref.dtype)


def _mha_kernel(q_ref, kv_ref, bias_ref, o_ref, *, n_heads):
    """All heads of one (batch, q-tile) per grid step.

    q_ref:(1,Tq,D) bf16 (softmax scale already folded into the Q projection weights),
    kv_ref:(1,Sk,2D) bf16 ([K|V] lane-concat), bias_ref:(1,Tq,Sk) bf16 additive mask bias.
    Each head's output is stored directly into its lane slice of the (1,Tq,D) output
    (no transposes, no concatenate)."""
    d_model = q_ref.shape[-1]
    dk = d_model // n_heads
    q = q_ref[0]                                   # (Tq, D)
    kv = kv_ref[0]                                 # (Sk, 2D)
    bias = bias_ref[0].astype(jnp.float32)         # (Tq, Sk) additive (0 / -1e9)

    for h in range(n_heads):                       # static unroll
        lo = h * dk
        qh = q[:, lo:lo + dk]                      # (Tq, dk)
        kh = kv[:, lo:lo + dk]                     # (Sk, dk)
        vh = kv[:, d_model + lo:d_model + lo + dk] # (Sk, dk)
        # QK^T without an explicit transpose: contract the last axes on the MXU.
        s = lax.dot_general(qh, kh, (((1,), (1,)), ((), ())),
                            preferred_element_type=jnp.float32)
        s = s + bias
        s = s - jnp.max(s, axis=-1, keepdims=True)
        p = jnp.exp(s)
        p = p * pl.reciprocal(jnp.sum(p, axis=-1, keepdims=True), approx=True)
        o_ref[0, :, lo:lo + dk] = jnp.dot(p.astype(jnp.bfloat16), vh,
                                          preferred_element_type=jnp.float32
                                          ).astype(o_ref.dtype)


# ----------------------------- Kernel wrappers ------------------------------

def matmul_bias(x, w, b, out_dtype=jnp.bfloat16):
    M, K = x.shape
    N = w.shape[1]
    tm, Mp = _tile_and_pad(M, 512 if _BIG_VMEM else 256, 8)
    tn, Np = _tile_and_pad(N, 1024 if _BIG_VMEM else 512, 128)
    tk, Kp = _tile_and_pad(K, 512, 128)

    xp = x if (Mp == M and Kp == K) else jnp.pad(x, ((0, Mp - M), (0, Kp - K)))
    wp = w if (Kp == K and Np == N) else jnp.pad(w, ((0, Kp - K), (0, Np - N)))
    bp = b if Np == N else jnp.pad(b, ((0, 0), (0, Np - N)))

    out = pl.pallas_call(
        _matmul_bias_kernel,
        out_shape=jax.ShapeDtypeStruct((Mp, Np), out_dtype),
        grid=(Mp // tm, Np // tn, Kp // tk),
        in_specs=[pl.BlockSpec((tm, tk), lambda i, j, k: (i, k)),
                  pl.BlockSpec((tk, tn), lambda i, j, k: (k, j)),
                  pl.BlockSpec((1, tn), lambda i, j, k: (0, j))],
        out_specs=pl.BlockSpec((tm, tn), lambda i, j, k: (i, j)),
        scratch_shapes=[pltpu.VMEM((tm, tn), jnp.float32)],
        compiler_params=pltpu.CompilerParams(
            dimension_semantics=("parallel", "parallel", "arbitrary"),
            vmem_limit_bytes=_VMEM_LIMIT),
    )(xp, wp, bp)
    if Mp != M or Np != N:
        out = out[:M, :N]
    return out


def linear_add_ln(x, w, b, residual, gamma, beta, eps=1e-5):
    """bf16 out = LayerNorm(residual + x @ w + b)."""
    M, K = x.shape
    N = w.shape[1]
    tm, Mp = _tile_and_pad(M, 512, 8)
    xp = x if Mp == M else jnp.pad(x, ((0, Mp - M), (0, 0)))
    rp = residual if Mp == M else jnp.pad(residual, ((0, Mp - M), (0, 0)))
    out = pl.pallas_call(
        partial(_linear_add_ln_kernel, eps=eps),
        out_shape=jax.ShapeDtypeStruct((Mp, N), jnp.bfloat16),
        grid=(Mp // tm,),
        in_specs=[pl.BlockSpec((tm, K), lambda i: (i, 0)),
                  pl.BlockSpec((K, N), lambda i: (0, 0)),
                  pl.BlockSpec((1, N), lambda i: (0, 0)),
                  pl.BlockSpec((tm, N), lambda i: (i, 0)),
                  pl.BlockSpec((1, N), lambda i: (0, 0)),
                  pl.BlockSpec((1, N), lambda i: (0, 0))],
        out_specs=pl.BlockSpec((tm, N), lambda i: (i, 0)),
        compiler_params=pltpu.CompilerParams(
            dimension_semantics=("parallel",),
            vmem_limit_bytes=_VMEM_LIMIT),
    )(xp, w, b, rp, gamma, beta)
    return out[:M] if Mp != M else out


def ffn_add_ln(x, p, gamma, beta, eps=1e-5):
    """bf16 out = LayerNorm(x + relu(x @ w1 + b1) @ w2 + b2), F axis tiled + accumulated."""
    M, D = x.shape
    F = p['w1'].shape[1]
    tm, Mp = _tile_and_pad(M, 256, 8)
    tf, Fp = _tile_and_pad(F, 2048 if _BIG_VMEM else 1024, 128)

    w1, b1, w2 = p['w1'], p['b1'], p['w2']
    if Fp != F:                         # zero-padded F contributes relu(0)@0 = 0
        w1 = jnp.pad(w1, ((0, 0), (0, Fp - F)))
        b1 = jnp.pad(b1, ((0, 0), (0, Fp - F)))
        w2 = jnp.pad(w2, ((0, Fp - F), (0, 0)))
    xp = x if Mp == M else jnp.pad(x, ((0, Mp - M), (0, 0)))

    out = pl.pallas_call(
        partial(_ffn_add_ln_kernel, eps=eps),
        out_shape=jax.ShapeDtypeStruct((Mp, D), jnp.bfloat16),
        grid=(Mp // tm, Fp // tf),
        in_specs=[pl.BlockSpec((tm, D), lambda i, f: (i, 0)),
                  pl.BlockSpec((D, tf), lambda i, f: (0, f)),
                  pl.BlockSpec((1, tf), lambda i, f: (0, f)),
                  pl.BlockSpec((tf, D), lambda i, f: (f, 0)),
                  pl.BlockSpec((1, D), lambda i, f: (0, 0)),
                  pl.BlockSpec((1, D), lambda i, f: (0, 0)),
                  pl.BlockSpec((1, D), lambda i, f: (0, 0))],
        out_specs=pl.BlockSpec((tm, D), lambda i, f: (i, 0)),
        scratch_shapes=[pltpu.VMEM((tm, D), jnp.float32)],
        compiler_params=pltpu.CompilerParams(
            dimension_semantics=("parallel", "arbitrary"),
            vmem_limit_bytes=_VMEM_LIMIT),
    )(xp, w1, b1, w2, p['b2'], gamma, beta)
    return out[:M] if Mp != M else out


def mha_core(q, kv, bias, n_heads):
    """q:(B,Sq,D) bf16, kv:(B,Sk,2D) bf16 ([K|V]), bias:(B,Sq,Sk) bf16 additive -> (B,Sq,D) bf16."""
    B, Sq, D = q.shape
    Sk = kv.shape[1]
    tq, Sqp = _tile_and_pad(Sq, 512, 8)
    if Sqp != Sq:
        q = jnp.pad(q, ((0, 0), (0, Sqp - Sq), (0, 0)))
        bias = jnp.pad(bias, ((0, 0), (0, Sqp - Sq), (0, 0)))
    # TODO(synk): flash-style Sk tiling (running max/sum scratch) for long sequences.
    out = pl.pallas_call(
        partial(_mha_kernel, n_heads=n_heads),
        out_shape=jax.ShapeDtypeStruct((B, Sqp, D), jnp.bfloat16),
        grid=(B, Sqp // tq),
        in_specs=[pl.BlockSpec((1, tq, D), lambda b, i: (b, i, 0)),
                  pl.BlockSpec((1, Sk, 2 * D), lambda b, i: (b, 0, 0)),
                  pl.BlockSpec((1, tq, Sk), lambda b, i: (b, i, 0))],
        out_specs=pl.BlockSpec((1, tq, D), lambda b, i: (b, i, 0)),
        compiler_params=pltpu.CompilerParams(
            dimension_semantics=("parallel", "parallel"),
            vmem_limit_bytes=_VMEM_LIMIT),
    )(q, kv, bias)
    return out[:, :Sq, :] if Sqp != Sq else out


# ----------------------------- Model definition ------------------------------

def sinusoidal_pe(seq_len, d_model):
    pos = jnp.arange(seq_len, dtype=jnp.float32)[:, None]
    i = jnp.arange(0, d_model, 2, dtype=jnp.float32)
    div = jnp.exp(-math.log(10000.0) * i / d_model)
    pe = jnp.zeros((seq_len, d_model), jnp.float32)
    pe = pe.at[:, 0::2].set(jnp.sin(pos * div))
    pe = pe.at[:, 1::2].set(jnp.cos(pos * div))
    return pe


def init_transformer_params(key, src_vocab, tgt_vocab, enc_seq_len, dec_seq_len,
                            d_model, n_heads, n_blocks, d_ffn):
    keys = iter(jax.random.split(key, 4 + n_blocks * 64))
    attn_scale = 1.0 / math.sqrt(d_model // n_heads)

    def dense(fan_in, fan_out, w_scale=1.0):
        w = jax.random.normal(next(keys), (fan_in, fan_out), jnp.float32) * 0.02 * w_scale
        b = jax.random.normal(next(keys), (1, fan_out), jnp.float32) * 0.02 * w_scale
        return w.astype(jnp.bfloat16), b          # weights bf16 (MXU), biases f32

    def attn_params():
        # softmax 1/sqrt(d_k) folded into the Q projection (zero runtime cost).
        wq, bq = dense(d_model, d_model, w_scale=attn_scale)
        wk, bk = dense(d_model, d_model)
        wv, bv = dense(d_model, d_model)
        wo, bo = dense(d_model, d_model)
        return {
            'w_qkv': jnp.concatenate([wq, wk, wv], axis=1),
            'b_qkv': jnp.concatenate([bq, bk, bv], axis=1),
            'w_q': wq, 'b_q': bq,
            'w_kv': jnp.concatenate([wk, wv], axis=1),
            'b_kv': jnp.concatenate([bk, bv], axis=1),
            'w_o': wo, 'b_o': bo,
        }

    def ffn_params():
        w1, b1 = dense(d_model, d_ffn)
        w2, b2 = dense(d_ffn, d_model)
        return {'w1': w1, 'b1': b1, 'w2': w2, 'b2': b2}

    def ln_params():
        return jnp.ones((1, d_model), jnp.float32), jnp.zeros((1, d_model), jnp.float32)

    params = {
        'src_emb': jax.random.normal(next(keys), (src_vocab, d_model), jnp.float32) * 0.02,
        'tgt_emb': jax.random.normal(next(keys), (tgt_vocab, d_model), jnp.float32) * 0.02,
        'pe_enc': sinusoidal_pe(enc_seq_len, d_model),
        'pe_dec': sinusoidal_pe(dec_seq_len, d_model),
        'enc_blocks': [],
        'dec_blocks': [],
    }
    for _ in range(n_blocks):
        g1, b1 = ln_params()
        g2, b2 = ln_params()
        params['enc_blocks'].append({
            'attn': attn_params(), 'ffn': ffn_params(),
            'ln1_g': g1, 'ln1_b': b1, 'ln2_g': g2, 'ln2_b': b2,
        })
    for _ in range(n_blocks):
        g1, b1 = ln_params()
        g2, b2 = ln_params()
        g3, b3 = ln_params()
        params['dec_blocks'].append({
            'self_attn': attn_params(), 'cross_attn': attn_params(), 'ffn': ffn_params(),
            'ln1_g': g1, 'ln1_b': b1, 'ln2_g': g2, 'ln2_b': b2, 'ln3_g': g3, 'ln3_b': b3,
        })
    w_out, b_out = dense(d_model, tgt_vocab)
    params['out_w'], params['out_b'] = w_out, b_out
    return params


def _mask_to_bias(mask):
    """(B,Sq,Sk) 1/0 keep-mask -> additive bf16 bias (0 / -1e9). Computed once, reused by
    every layer: halves the mask HBM traffic per attention call vs a dense f32 mask."""
    return ((mask - 1.0) * 1e9).astype(jnp.bfloat16)


def transformer_forward(params, src, tgt, src_mask, trg_self_mask, trg_cross_mask, *, n_heads):
    d_model = params['src_emb'].shape[1]
    B, src_len = src.shape
    tgt_len = tgt.shape[1]
    emb_scale = math.sqrt(d_model)

    src_bias = _mask_to_bias(src_mask)
    self_bias = _mask_to_bias(trg_self_mask)
    cross_bias = _mask_to_bias(trg_cross_mask)

    # ---------------- Encoder ----------------
    x = (params['src_emb'][src] * emb_scale + params['pe_enc'][None, :src_len, :]
         ).astype(jnp.bfloat16)
    x = x.reshape(B * src_len, d_model)                       # bf16 residual stream
    for blk in params['enc_blocks']:
        a = blk['attn']
        qkv = matmul_bias(x, a['w_qkv'], a['b_qkv'])          # fused QKV projection
        q = qkv[:, :d_model].reshape(B, src_len, d_model)
        kv = qkv[:, d_model:].reshape(B, src_len, 2 * d_model)
        attn = mha_core(q, kv, src_bias, n_heads).reshape(B * src_len, d_model)
        x = linear_add_ln(attn, a['w_o'], a['b_o'], x, blk['ln1_g'], blk['ln1_b'])
        x = ffn_add_ln(x, blk['ffn'], blk['ln2_g'], blk['ln2_b'])
    enc_out = x                                               # (B*src_len, D) bf16

    # ---------------- Decoder ----------------
    y = (params['tgt_emb'][tgt] * emb_scale + params['pe_dec'][None, :tgt_len, :]
         ).astype(jnp.bfloat16)
    y = y.reshape(B * tgt_len, d_model)
    for blk in params['dec_blocks']:
        sa = blk['self_attn']
        qkv = matmul_bias(y, sa['w_qkv'], sa['b_qkv'])
        q = qkv[:, :d_model].reshape(B, tgt_len, d_model)
        kv = qkv[:, d_model:].reshape(B, tgt_len, 2 * d_model)
        attn = mha_core(q, kv, self_bias, n_heads).reshape(B * tgt_len, d_model)
        y = linear_add_ln(attn, sa['w_o'], sa['b_o'], y, blk['ln1_g'], blk['ln1_b'])

        ca = blk['cross_attn']
        q = matmul_bias(y, ca['w_q'], ca['b_q']).reshape(B, tgt_len, d_model)
        kv = matmul_bias(enc_out, ca['w_kv'], ca['b_kv']).reshape(B, src_len, 2 * d_model)
        attn = mha_core(q, kv, cross_bias, n_heads).reshape(B * tgt_len, d_model)
        y = linear_add_ln(attn, ca['w_o'], ca['b_o'], y, blk['ln2_g'], blk['ln2_b'])

        y = ffn_add_ln(y, blk['ffn'], blk['ln3_g'], blk['ln3_b'])

    # ---------------- Output projection (tiled over M/N/K for big vocabs) ----------------
    logits = matmul_bias(y, params['out_w'], params['out_b'], out_dtype=jnp.float32)
    return logits.reshape(B, tgt_len, -1)


# ----------------------------- Main ------------------------------

if __name__ == "__main__":
    # Small, module-consistent shapes.
    SRC_VOCAB, TGT_VOCAB = 64, 64
    ENC_SEQ_LEN, DEC_SEQ_LEN = 8, 8
    D_MODEL, N_HEADS, N_BLOCKS, D_FFN = 32, 4, 2, 64
    BATCH = 2

    root = jax.random.PRNGKey(0)
    k_param, k_src, k_tgt = jax.random.split(root, 3)

    params = init_transformer_params(k_param, SRC_VOCAB, TGT_VOCAB, ENC_SEQ_LEN, DEC_SEQ_LEN,
                                     D_MODEL, N_HEADS, N_BLOCKS, D_FFN)

    src = jax.random.randint(k_src, (BATCH, ENC_SEQ_LEN), 0, SRC_VOCAB, dtype=jnp.int32)
    tgt = jax.random.randint(k_tgt, (BATCH, DEC_SEQ_LEN), 0, TGT_VOCAB, dtype=jnp.int32)

    src_mask = jnp.ones((BATCH, ENC_SEQ_LEN, ENC_SEQ_LEN), jnp.float32)
    trg_self_mask = jnp.broadcast_to(
        jnp.tril(jnp.ones((DEC_SEQ_LEN, DEC_SEQ_LEN), jnp.float32)),
        (BATCH, DEC_SEQ_LEN, DEC_SEQ_LEN)).copy()
    trg_cross_mask = jnp.ones((BATCH, DEC_SEQ_LEN, ENC_SEQ_LEN), jnp.float32)

    fwd = jax.jit(partial(transformer_forward, n_heads=N_HEADS))
    out = fwd(params, src, tgt, src_mask, trg_self_mask, trg_cross_mask)
    out = jax.block_until_ready(out)

    assert out.shape == (BATCH, DEC_SEQ_LEN, TGT_VOCAB), out.shape
    assert bool(jnp.all(jnp.isfinite(out)))
    print("KERNEL_OK")
</pallas_src>

<mosaic_0001>
module attributes {stable_mosaic.version = 11 : i64} {
  func.func @_matmul_bias_kernel(%arg0: i32, %arg1: i32, %arg2: i32, %arg3: memref<16x32xbf16, #tpu.memory_space<vmem>>, %arg4: memref<32x96xbf16, #tpu.memory_space<vmem>>, %arg5: memref<1x96xf32, #tpu.memory_space<vmem>>, %arg6: memref<16x96xbf16, #tpu.memory_space<vmem>>, %arg7: memref<16x96xf32, #tpu.memory_space<vmem>>) attributes {dimension_semantics = [#tpu.dimension_semantics<parallel>, #tpu.dimension_semantics<parallel>, #tpu.dimension_semantics<arbitrary>], iteration_bounds = array<i64: 1, 1, 1>, scalar_prefetch = 0 : i64, scratch_operands = 1 : i64, tpu.core_type = #tpu.core_type<tc>, window_params = [{transform_indices = @transform_0, window_bounds = array<i64: 16, 32>}, {transform_indices = @transform_1, window_bounds = array<i64: 32, 96>}, {transform_indices = @transform_2, window_bounds = array<i64: 1, 96>}, {transform_indices = @transform_3, window_bounds = array<i64: 16, 96>}]} {
    %c0_i32 = arith.constant 0 : i32
    %0 = arith.cmpi eq, %arg2, %c0_i32 : i32
    %1 = arith.extui %0 : i1 to i32
    %c0_i32_0 = arith.constant 0 : i32
    %2 = arith.cmpi ne, %1, %c0_i32_0 : i32
    scf.if %2 {
      %cst_10 = arith.constant 0.000000e+00 : f32
      %12 = vector.broadcast %cst_10 : f32 to vector<16x96xf32>
      %c0_11 = arith.constant 0 : index
      %c0_12 = arith.constant 0 : index
      %13 = vector.load %arg7[%c0_11, %c0_12] : memref<16x96xf32, #tpu.memory_space<vmem>>, vector<16x96xf32>
      tpu.vector_store %arg7[%c0_11, %c0_12], %12 {strides = array<i32>} : memref<16x96xf32, #tpu.memory_space<vmem>>, vector<16x96xf32>,
    } else {
    }
    %c0 = arith.constant 0 : index
    %c0_1 = arith.constant 0 : index
    %3 = vector.load %arg7[%c0, %c0_1] : memref<16x96xf32, #tpu.memory_space<vmem>>, vector<16x96xf32>
    %c0_2 = arith.constant 0 : index
    %c0_3 = arith.constant 0 : index
    %4 = vector.load %arg3[%c0_2, %c0_3] : memref<16x32xbf16, #tpu.memory_space<vmem>>, vector<16x32xbf16>
    %c0_4 = arith.constant 0 : index
    %c0_5 = arith.constant 0 : index
    %5 = vector.load %arg4[%c0_4, %c0_5] : memref<32x96xbf16, #tpu.memory_space<vmem>>, vector<32x96xbf16>
    %cst = arith.constant dense<0.000000e+00> : vector<16x96xf32>
    %6 = tpu.matmul %4, %5, %cst {dimension_numbers = #tpu.dot_dimension_numbers<[1], [0], [0], [1], [0, 0, 1, 1], [], []>} : vector<16x32xbf16>, vector<32x96xbf16>, vector<16x96xf32> -> vector<16x96xf32>
    %7 = arith.addf %3, %6 : vector<16x96xf32>
    %c0_6 = arith.constant 0 : index
    %c0_7 = arith.constant 0 : index
    %8 = vector.load %arg7[%c0_6, %c0_7] : memref<16x96xf32, #tpu.memory_space<vmem>>, vector<16x96xf32>
    tpu.vector_store %arg7[%c0_6, %c0_7], %7 {strides = array<i32>} : memref<16x96xf32, #tpu.memory_space<vmem>>, vector<16x96xf32>,
    %c0_i32_8 = arith.constant 0 : i32
    %9 = arith.cmpi eq, %arg2, %c0_i32_8 : i32
    %10 = arith.extui %9 : i1 to i32
    %c0_i32_9 = arith.constant 0 : i32
    %11 = arith.cmpi ne, %10, %c0_i32_9 : i32
    scf.if %11 {
      %c0_10 = arith.constant 0 : index
      %c0_11 = arith.constant 0 : index
      %12 = vector.load %arg7[%c0_10, %c0_11] : memref<16x96xf32, #tpu.memory_space<vmem>>, vector<16x96xf32>
      %c0_12 = arith.constant 0 : index
      %c0_13 = arith.constant 0 : index
      %13 = vector.load %arg5[%c0_12, %c0_13] : memref<1x96xf32, #tpu.memory_space<vmem>>, vector<1x96xf32>
      %14 = vector.broadcast %13 : vector<1x96xf32> to vector<16x96xf32>
      %15 = arith.addf %12, %14 : vector<16x96xf32>
      %16 = arith.truncf %15 : vector<16x96xf32> to vector<16x96xbf16>
      %c0_14 = arith.constant 0 : index
      %c0_15 = arith.constant 0 : index
      %17 = vector.load %arg6[%c0_14, %c0_15] : memref<16x96xbf16, #tpu.memory_space<vmem>>, vector<16x96xbf16>
      tpu.vector_store %arg6[%c0_14, %c0_15], %16 {strides = array<i32>} : memref<16x96xbf16, #tpu.memory_space<vmem>>, vector<16x96xbf16>,
    } else {
    }
    return
  }
  func.func @transform_0(%arg0: i32, %arg1: i32, %arg2: i32) -> (i32, i32) {
    %c0_i32 = arith.constant 0 : i32
    return %arg0, %arg2 : i32, i32
  }
  func.func @transform_1(%arg0: i32, %arg1: i32, %arg2: i32) -> (i32, i32) {
    %c0_i32 = arith.constant 0 : i32
    return %arg2, %arg1 : i32, i32
  }
  func.func @transform_2(%arg0: i32, %arg1: i32, %arg2: i32) -> (i32, i32) {
    %c0_i32 = arith.constant 0 : i32
    %c0_i32_0 = arith.constant 0 : i32
    return %c0_i32, %arg1 : i32, i32
  }
  func.func @transform_3(%arg0: i32, %arg1: i32, %arg2: i32) -> (i32, i32) {
    %c0_i32 = arith.constant 0 : i32
    return %arg0, %arg1 : i32, i32
  }
}

module attributes {stable_mosaic.version = 11 : i64} {
  func.func @_mha_kernel(%arg0: i32, %arg1: i32, %arg2: memref<1x8x32xbf16, #tpu.memory_space<vmem>>, %arg3: memref<1x8x64xbf16, #tpu.memory_space<vmem>>, %arg4: memref<1x8x8xbf16, #tpu.memory_space<vmem>>, %arg5: memref<1x8x32xbf16, #tpu.memory_space<vmem>>) attributes {dimension_semantics = [#tpu.dimension_semantics<parallel>, #tpu.dimension_semantics<parallel>], iteration_bounds = array<i64: 2, 1>, scalar_prefetch = 0 : i64, scratch_operands = 0 : i64, tpu.core_type = #tpu.core_type<tc>, window_params = [{transform_indices = @transform_0, window_bounds = array<i64: 1, 8, 32>}, {transform_indices = @transform_1, window_bounds = array<i64: 1, 8, 64>}, {transform_indices = @transform_2, window_bounds = array<i64: 1, 8, 8>}, {transform_indices = @transform_3, window_bounds = array<i64: 1, 8, 32>}]} {
    %c0 = arith.constant 0 : index
    %c0_0 = arith.constant 0 : index
    %c0_1 = arith.constant 0 : index
    %0 = vector.load %arg2[%c0, %c0_0, %c0_1] : memref<1x8x32xbf16, #tpu.memory_space<vmem>>, vector<1x8x32xbf16>
    %1 = vector.shape_cast %0 : vector<1x8x32xbf16> to vector<8x32xbf16>
    %c0_2 = arith.constant 0 : index
    %c0_3 = arith.constant 0 : index
    %c0_4 = arith.constant 0 : index
    %2 = vector.load %arg3[%c0_2, %c0_3, %c0_4] : memref<1x8x64xbf16, #tpu.memory_space<vmem>>, vector<1x8x64xbf16>
    %3 = vector.shape_cast %2 : vector<1x8x64xbf16> to vector<8x64xbf16>
    %c0_5 = arith.constant 0 : index
    %c0_6 = arith.constant 0 : index
    %c0_7 = arith.constant 0 : index
    %4 = vector.load %arg4[%c0_5, %c0_6, %c0_7] : memref<1x8x8xbf16, #tpu.memory_space<vmem>>, vector<1x8x8xbf16>
    %5 = vector.shape_cast %4 : vector<1x8x8xbf16> to vector<8x8xbf16>
    %6 = arith.extf %5 : vector<8x8xbf16> to vector<8x8xf32>
    %7 = vector.extract_strided_slice %1 {offsets = [0, 0], sizes = [8, 8], strides = [1, 1]} : vector<8x32xbf16> to vector<8x8xbf16>
    %8 = vector.extract_strided_slice %3 {offsets = [0, 0], sizes = [8, 8], strides = [1, 1]} : vector<8x64xbf16> to vector<8x8xbf16>
    %9 = vector.extract_strided_slice %3 {offsets = [0, 32], sizes = [8, 8], strides = [1, 1]} : vector<8x64xbf16> to vector<8x8xbf16>
    %cst = arith.constant dense<0.000000e+00> : vector<8x8xf32>
    %10 = tpu.matmul %7, %8, %cst {dimension_numbers = #tpu.dot_dimension_numbers<[1], [1], [0], [0], [0, 0, 1, 0], [], []>} : vector<8x8xbf16>, vector<8x8xbf16>, vector<8x8xf32> -> vector<8x8xf32>
    %11 = arith.addf %10, %6 : vector<8x8xf32>
    %cst_8 = arith.constant dense<0xFF800000> : vector<8xf32>
    %12 = vector.multi_reduction <maximumf>, %11, %cst_8 [1] : vector<8x8xf32> to vector<8xf32>
    %13 = vector.shape_cast %12 : vector<8xf32> to vector<8x1xf32>
    %14 = vector.broadcast %13 : vector<8x1xf32> to vector<8x8xf32>
    %15 = arith.subf %11, %14 : vector<8x8xf32>
    %16 = math.exp %15 : vector<8x8xf32>
    %cst_9 = arith.constant dense<0.000000e+00> : vector<8xf32>
    %17 = vector.multi_reduction <add>, %16, %cst_9 [1] : vector<8x8xf32> to vector<8xf32>
    %18 = vector.shape_cast %17 : vector<8xf32> to vector<8x1xf32>
    %19 = tpu.reciprocal %18 {approx = true} : vector<8x1xf32> -> vector<8x1xf32>
    %20 = vector.broadcast %19 : vector<8x1xf32> to vector<8x8xf32>
    %21 = arith.mulf %16, %20 : vector<8x8xf32>
    %22 = arith.truncf %21 : vector<8x8xf32> to vector<8x8xbf16>
    %cst_10 = arith.constant dense<0.000000e+00> : vector<8x8xf32>
    %23 = tpu.matmul %22, %9, %cst_10 {dimension_numbers = #tpu.dot_dimension_numbers<[1], [0], [0], [1], [0, 0, 1, 1], [], []>} : vector<8x8xbf16>, vector<8x8xbf16>, vector<8x8xf32> -> vector<8x8xf32>
    %24 = arith.truncf %23 : vector<8x8xf32> to vector<8x8xbf16>
    %c0_11 = arith.constant 0 : index
    %c0_12 = arith.constant 0 : index
    %c0_13 = arith.constant 0 : index
    %25 = vector.load %arg5[%c0_11, %c0_12, %c0_13] : memref<1x8x32xbf16, #tpu.memory_space<vmem>>, vector<1x8x8xbf16>
    %26 = vector.shape_cast %25 : vector<1x8x8xbf16> to vector<8x8xbf16>
    %27 = vector.shape_cast %24 : vector<8x8xbf16> to vector<1x8x8xbf16>
    tpu.vector_store %arg5[%c0_11, %c0_12, %c0_13], %27 {strides = array<i32>} : memref<1x8x32xbf16, #tpu.memory_space<vmem>>, vector<1x8x8xbf16>,
    %28 = vector.extract_strided_slice %1 {offsets = [0, 8], sizes = [8, 8], strides = [1, 1]} : vector<8x32xbf16> to vector<8x8xbf16>
    %29 = vector.extract_strided_slice %3 {offsets = [0, 8], sizes = [8, 8], strides = [1, 1]} : vector<8x64xbf16> to vector<8x8xbf16>
    %30 = vector.extract_strided_slice %3 {offsets = [0, 40], sizes = [8, 8], strides = [1, 1]} : vector<8x64xbf16> to vector<8x8xbf16>
    %cst_14 = arith.constant dense<0.000000e+00> : vector<8x8xf32>
    %31 = tpu.matmul %28, %29, %cst_14 {dimension_numbers = #tpu.dot_dimension_numbers<[1], [1], [0], [0], [0, 0, 1, 0], [], []>} : vector<8x8xbf16>, vector<8x8xbf16>, vector<8x8xf32> -> vector<8x8xf32>
    %32 = arith.addf %31, %6 : vector<8x8xf32>
    %cst_15 = arith.constant dense<0xFF800000> : vector<8xf32>
    %33 = vector.multi_reduction <maximumf>, %32, %cst_15 [1] : vector<8x8xf32> to vector<8xf32>
    %34 = vector.shape_cast %33 : vector<8xf32> to vector<8x1xf32>
    %35 = vector.broadcast %34 : vector<8x1xf32> to vector<8x8xf32>
    %36 = arith.subf %32, %35 : vector<8x8xf32>
    %37 = math.exp %36 : vector<8x8xf32>
    %cst_16 = arith.constant dense<0.000000e+00> : vector<8xf32>
    %38 = vector.multi_reduction <add>, %37, %cst_16 [1] : vector<8x8xf32> to vector<8xf32>
    %39 = vector.shape_cast %38 : vector<8xf32> to vector<8x1xf32>
    %40 = tpu.reciprocal %39 {approx = true} : vector<8x1xf32> -> vector<8x1xf32>
    %41 = vector.broadcast %40 : vector<8x1xf32> to vector<8x8xf32>
    %42 = arith.mulf %37, %41 : vector<8x8xf32>
    %43 = arith.truncf %42 : vector<8x8xf32> to vector<8x8xbf16>
    %cst_17 = arith.constant dense<0.000000e+00> : vector<8x8xf32>
    %44 = tpu.matmul %43, %30, %cst_17 {dimension_numbers = #tpu.dot_dimension_numbers<[1], [0], [0], [1], [0, 0, 1, 1], [], []>} : vector<8x8xbf16>, vector<8x8xbf16>, vector<8x8xf32> -> vector<8x8xf32>
    %45 = arith.truncf %44 : vector<8x8xf32> to vector<8x8xbf16>
    %c0_18 = arith.constant 0 : index
    %c0_19 = arith.constant 0 : index
    %c8 = arith.constant 8 : index
    %46 = vector.load %arg5[%c0_18, %c0_19, %c8] : memref<1x8x32xbf16, #tpu.memory_space<vmem>>, vector<1x8x8xbf16>
    %47 = vector.shape_cast %46 : vector<1x8x8xbf16> to vector<8x8xbf16>
    %48 = vector.shape_cast %45 : vector<8x8xbf16> to vector<1x8x8xbf16>
    tpu.vector_store %arg5[%c0_18, %c0_19, %c8], %48 {strides = array<i32>} : memref<1x8x32xbf16, #tpu.memory_space<vmem>>, vector<1x8x8xbf16>,
    %49 = vector.extract_strided_slice %1 {offsets = [0, 16], sizes = [8, 8], strides = [1, 1]} : vector<8x32xbf16> to vector<8x8xbf16>
    %50 = vector.extract_strided_slice %3 {offsets = [0, 16], sizes = [8, 8], strides = [1, 1]} : vector<8x64xbf16> to vector<8x8xbf16>
    %51 = vector.extract_strided_slice %3 {offsets = [0, 48], sizes = [8, 8], strides = [1, 1]} : vector<8x64xbf16> to vector<8x8xbf16>
    %cst_20 = arith.constant dense<0.000000e+00> : vector<8x8xf32>
    %52 = tpu.matmul %49, %50, %cst_20 {dimension_numbers = #tpu.dot_dimension_numbers<[1], [1], [0], [0], [0, 0, 1, 0], [], []>} : vector<8x8xbf16>, vector<8x8xbf16>, vector<8x8xf32> -> vector<8x8xf32>
    %53 = arith.addf %52, %6 : vector<8x8xf32>
    %cst_21 = arith.constant dense<0xFF800000> : vector<8xf32>
    %54 = vector.multi_reduction <maximumf>, %53, %cst_21 [1] : vector<8x8xf32> to vector<8xf32>
    %55 = vector.shape_cast %54 : vector<8xf32> to vector<8x1xf32>
    %56 = vector.broadcast %55 : vector<8x1xf32> to vector<8x8xf32>
    %57 = arith.subf %53, %56 : vector<8x8xf32>
    %58 = math.exp %57 : vector<8x8xf32>
    %cst_22 = arith.constant dense<0.000000e+00> : vector<8xf32>
    %59 = vector.multi_reduction <add>, %58, %cst_22 [1] : vector<8x8xf32> to vector<8xf32>
    %60 = vector.shape_cast %59 : vector<8xf32> to vector<8x1xf32>
    %61 = tpu.reciprocal %60 {approx = true} : vector<8x1xf32> -> vector<8x1xf32>
    %62 = vector.broadcast %61 : vector<8x1xf32> to vector<8x8xf32>
    %63 = arith.mulf %58, %62 : vector<8x8xf32>
    %64 = arith.truncf %63 : vector<8x8xf32> to vector<8x8xbf16>
    %cst_23 = arith.constant dense<0.000000e+00> : vector<8x8xf32>
    %65 = tpu.matmul %64, %51, %cst_23 {dimension_numbers = #tpu.dot_dimension_numbers<[1], [0], [0], [1], [0, 0, 1, 1], [], []>} : vector<8x8xbf16>, vector<8x8xbf16>, vector<8x8xf32> -> vector<8x8xf32>
    %66 = arith.truncf %65 : vector<8x8xf32> to vector<8x8xbf16>
    %c0_24 = arith.constant 0 : index
    %c0_25 = arith.constant 0 : index
    %c16 = arith.constant 16 : index
    %67 = vector.load %arg5[%c0_24, %c0_25, %c16] : memref<1x8x32xbf16, #tpu.memory_space<vmem>>, vector<1x8x8xbf16>
    %68 = vector.shape_cast %67 : vector<1x8x8xbf16> to vector<8x8xbf16>
    %69 = vector.shape_cast %66 : vector<8x8xbf16> to vector<1x8x8xbf16>
    tpu.vector_store %arg5[%c0_24, %c0_25, %c16], %69 {strides = array<i32>} : memref<1x8x32xbf16, #tpu.memory_space<vmem>>, vector<1x8x8xbf16>,
    %70 = vector.extract_strided_slice %1 {offsets = [0, 24], sizes = [8, 8], strides = [1, 1]} : vector<8x32xbf16> to vector<8x8xbf16>
    %71 = vector.extract_strided_slice %3 {offsets = [0, 24], sizes = [8, 8], strides = [1, 1]} : vector<8x64xbf16> to vector<8x8xbf16>
    %72 = vector.extract_strided_slice %3 {offsets = [0, 56], sizes = [8, 8], strides = [1, 1]} : vector<8x64xbf16> to vector<8x8xbf16>
    %cst_26 = arith.constant dense<0.000000e+00> : vector<8x8xf32>
    %73 = tpu.matmul %70, %71, %cst_26 {dimension_numbers = #tpu.dot_dimension_numbers<[1], [1], [0], [0], [0, 0, 1, 0], [], []>} : vector<8x8xbf16>, vector<8x8xbf16>, vector<8x8xf32> -> vector<8x8xf32>
    %74 = arith.addf %73, %6 : vector<8x8xf32>
    %cst_27 = arith.constant dense<0xFF800000> : vector<8xf32>
    %75 = vector.multi_reduction <maximumf>, %74, %cst_27 [1] : vector<8x8xf32> to vector<8xf32>
    %76 = vector.shape_cast %75 : vector<8xf32> to vector<8x1xf32>
    %77 = vector.broadcast %76 : vector<8x1xf32> to vector<8x8xf32>
    %78 = arith.subf %74, %77 : vector<8x8xf32>
    %79 = math.exp %78 : vector<8x8xf32>
    %cst_28 = arith.constant dense<0.000000e+00> : vector<8xf32>
    %80 = vector.multi_reduction <add>, %79, %cst_28 [1] : vector<8x8xf32> to vector<8xf32>
    %81 = vector.shape_cast %80 : vector<8xf32> to vector<8x1xf32>
    %82 = tpu.reciprocal %81 {approx = true} : vector<8x1xf32> -> vector<8x1xf32>
    %83 = vector.broadcast %82 : vector<8x1xf32> to vector<8x8xf32>
    %84 = arith.mulf %79, %83 : vector<8x8xf32>
    %85 = arith.truncf %84 : vector<8x8xf32> to vector<8x8xbf16>
    %cst_29 = arith.constant dense<0.000000e+00> : vector<8x8xf32>
    %86 = tpu.matmul %85, %72, %cst_29 {dimension_numbers = #tpu.dot_dimension_numbers<[1], [0], [0], [1], [0, 0, 1, 1], [], []>} : vector<8x8xbf16>, vector<8x8xbf16>, vector<8x8xf32> -> vector<8x8xf32>
    %87 = arith.truncf %86 : vector<8x8xf32> to vector<8x8xbf16>
    %c0_30 = arith.constant 0 : index
    %c0_31 = arith.constant 0 : index
    %c24 = arith.constant 24 : index
    %88 = vector.load %arg5[%c0_30, %c0_31, %c24] : memref<1x8x32xbf16, #tpu.memory_space<vmem>>, vector<1x8x8xbf16>
    %89 = vector.shape_cast %88 : vector<1x8x8xbf16> to vector<8x8xbf16>
    %90 = vector.shape_cast %87 : vector<8x8xbf16> to vector<1x8x8xbf16>
    tpu.vector_store %arg5[%c0_30, %c0_31, %c24], %90 {strides = array<i32>} : memref<1x8x32xbf16, #tpu.memory_space<vmem>>, vector<1x8x8xbf16>,
    return
  }
  func.func @transform_0(%arg0: i32, %arg1: i32) -> (i32, i32, i32) {
    %c0_i32 = arith.constant 0 : i32
    %c0_i32_0 = arith.constant 0 : i32
    return %arg0, %arg1, %c0_i32 : i32, i32, i32
  }
  func.func @transform_1(%arg0: i32, %arg1: i32) -> (i32, i32, i32) {
    %c0_i32 = arith.constant 0 : i32
    %c0_i32_0 = arith.constant 0 : i32
    %c0_i32_1 = arith.constant 0 : i32
    return %arg0, %c0_i32, %c0_i32_0 : i32, i32, i32
  }
  func.func @transform_2(%arg0: i32, %arg1: i32) -> (i32, i32, i32) {
    %c0_i32 = arith.constant 0 : i32
    %c0_i32_0 = arith.constant 0 : i32
    return %arg0, %arg1, %c0_i32 : i32, i32, i32
  }
  func.func @transform_3(%arg0: i32, %arg1: i32) -> (i32, i32, i32) {
    %c0_i32 = arith.constant 0 : i32
    %c0_i32_0 = arith.constant 0 : i32
    return %arg0, %arg1, %c0_i32 : i32, i32, i32
  }
}

module attributes {stable_mosaic.version = 11 : i64} {
  func.func @_linear_add_ln_kernel(%arg0: i32, %arg1: memref<16x32xbf16, #tpu.memory_space<vmem>>, %arg2: memref<32x32xbf16, #tpu.memory_space<vmem>>, %arg3: memref<1x32xf32, #tpu.memory_space<vmem>>, %arg4: memref<16x32xbf16, #tpu.memory_space<vmem>>, %arg5: memref<1x32xf32, #tpu.memory_space<vmem>>, %arg6: memref<1x32xf32, #tpu.memory_space<vmem>>, %arg7: memref<16x32xbf16, #tpu.memory_space<vmem>>) attributes {dimension_semantics = [#tpu.dimension_semantics<parallel>], iteration_bounds = array<i64: 1>, scalar_prefetch = 0 : i64, scratch_operands = 0 : i64, tpu.core_type = #tpu.core_type<tc>, window_params = [{transform_indices = @transform_0, window_bounds = array<i64: 16, 32>}, {pipeline_mode = #tpu.pipeline_mode<synchronous>, transform_indices = @transform_1, window_bounds = array<i64: 32, 32>}, {pipeline_mode = #tpu.pipeline_mode<synchronous>, transform_indices = @transform_2, window_bounds = array<i64: 1, 32>}, {transform_indices = @transform_3, window_bounds = array<i64: 16, 32>}, {pipeline_mode = #tpu.pipeline_mode<synchronous>, transform_indices = @transform_4, window_bounds = array<i64: 1, 32>}, {pipeline_mode = #tpu.pipeline_mode<synchronous>, transform_indices = @transform_5, window_bounds = array<i64: 1, 32>}, {transform_indices = @transform_6, window_bounds = array<i64: 16, 32>}]} {
    %c0 = arith.constant 0 : index
    %c0_0 = arith.constant 0 : index
    %0 = vector.load %arg1[%c0, %c0_0] : memref<16x32xbf16, #tpu.memory_space<vmem>>, vector<16x32xbf16>
    %c0_1 = arith.constant 0 : index
    %c0_2 = arith.constant 0 : index
    %1 = vector.load %arg2[%c0_1, %c0_2] : memref<32x32xbf16, #tpu.memory_space<vmem>>, vector<32x32xbf16>
    %cst = arith.constant dense<0.000000e+00> : vector<16x32xf32>
    %2 = tpu.matmul %0, %1, %cst {dimension_numbers = #tpu.dot_dimension_numbers<[1], [0], [0], [1], [0, 0, 1, 1], [], []>} : vector<16x32xbf16>, vector<32x32xbf16>, vector<16x32xf32> -> vector<16x32xf32>
    %c0_3 = arith.constant 0 : index
    %c0_4 = arith.constant 0 : index
    %3 = vector.load %arg3[%c0_3, %c0_4] : memref<1x32xf32, #tpu.memory_space<vmem>>, vector<1x32xf32>
    %4 = vector.broadcast %3 : vector<1x32xf32> to vector<16x32xf32>
    %5 = arith.addf %2, %4 : vector<16x32xf32>
    %c0_5 = arith.constant 0 : index
    %c0_6 = arith.constant 0 : index
    %6 = vector.load %arg4[%c0_5, %c0_6] : memref<16x32xbf16, #tpu.memory_space<vmem>>, vector<16x32xbf16>
    %7 = arith.extf %6 : vector<16x32xbf16> to vector<16x32xf32>
    %8 = arith.addf %5, %7 : vector<16x32xf32>
    %cst_7 = arith.constant dense<0.000000e+00> : vector<16xf32>
    %9 = vector.multi_reduction <add>, %8, %cst_7 [1] : vector<16x32xf32> to vector<16xf32>
    %10 = vector.shape_cast %9 : vector<16xf32> to vector<16x1xf32>
    %11 = arith.mulf %8, %8 : vector<16x32xf32>
    %cst_8 = arith.constant dense<0.000000e+00> : vector<16xf32>
    %12 = vector.multi_reduction <add>, %11, %cst_8 [1] : vector<16x32xf32> to vector<16xf32>
    %13 = vector.shape_cast %12 : vector<16xf32> to vector<16x1xf32>
    %cst_9 = arith.constant 3.200000e+01 : f32
    %14 = vector.broadcast %cst_9 : f32 to vector<16x1xf32>
    %15 = arith.divf %10, %14 : vector<16x1xf32>
    %cst_10 = arith.constant 3.200000e+01 : f32
    %16 = vector.broadcast %cst_10 : f32 to vector<16x1xf32>
    %17 = arith.divf %13, %16 : vector<16x1xf32>
    %18 = arith.mulf %15, %15 : vector<16x1xf32>
    %19 = arith.subf %17, %18 : vector<16x1xf32>
    %cst_11 = arith.constant 0.000000e+00 : f32
    %20 = vector.broadcast %cst_11 : f32 to vector<16x1xf32>
    %21 = arith.maximumf %19, %20 : vector<16x1xf32>
    %22 = vector.broadcast %15 : vector<16x1xf32> to vector<16x32xf32>
    %23 = arith.subf %8, %22 : vector<16x32xf32>
    %cst_12 = arith.constant 9.99999974E-6 : f32
    %24 = vector.broadcast %cst_12 : f32 to vector<16x1xf32>
    %25 = arith.addf %21, %24 : vector<16x1xf32>
    %26 = math.rsqrt %25 : vector<16x1xf32>
    %27 = vector.broadcast %26 : vector<16x1xf32> to vector<16x32xf32>
    %28 = arith.mulf %23, %27 : vector<16x32xf32>
    %c0_13 = arith.constant 0 : index
    %c0_14 = arith.constant 0 : index
    %29 = vector.load %arg5[%c0_13, %c0_14] : memref<1x32xf32, #tpu.memory_space<vmem>>, vector<1x32xf32>
    %30 = vector.broadcast %29 : vector<1x32xf32> to vector<16x32xf32>
    %31 = arith.mulf %28, %30 : vector<16x32xf32>
    %c0_15 = arith.constant 0 : index
    %c0_16 = arith.constant 0 : index
    %32 = vector.load %arg6[%c0_15, %c0_16] : memref<1x32xf32, #tpu.memory_space<vmem>>, vector<1x32xf32>
    %33 = vector.broadcast %32 : vector<1x32xf32> to vector<16x32xf32>
    %34 = arith.addf %31, %33 : vector<16x32xf32>
    %35 = arith.truncf %34 : vector<16x32xf32> to vector<16x32xbf16>
    %c0_17 = arith.constant 0 : index
    %c0_18 = arith.constant 0 : index
    %36 = vector.load %arg7[%c0_17, %c0_18] : memref<16x32xbf16, #tpu.memory_space<vmem>>, vector<16x32xbf16>
    tpu.vector_store %arg7[%c0_17, %c0_18], %35 {strides = array<i32>} : memref<16x32xbf16, #tpu.memory_space<vmem>>, vector<16x32xbf16>,
    return
  }
  func.func @transform_0(%arg0: i32) -> (i32, i32) {
    %c0_i32 = arith.constant 0 : i32
    %c0_i32_0 = arith.constant 0 : i32
    return %arg0, %c0_i32 : i32, i32
  }
  func.func @transform_1(%arg0: i32) -> (i32, i32) {
    %c0_i32 = arith.constant 0 : i32
    %c0_i32_0 = arith.constant 0 : i32
    %c0_i32_1 = arith.constant 0 : i32
    return %c0_i32, %c0_i32_0 : i32, i32
  }
  func.func @transform_2(%arg0: i32) -> (i32, i32) {
    %c0_i32 = arith.constant 0 : i32
    %c0_i32_0 = arith.constant 0 : i32
    %c0_i32_1 = arith.constant 0 : i32
    return %c0_i32, %c0_i32_0 : i32, i32
  }
  func.func @transform_3(%arg0: i32) -> (i32, i32) {
    %c0_i32 = arith.constant 0 : i32
    %c0_i32_0 = arith.constant 0 : i32
    return %arg0, %c0_i32 : i32, i32
  }
  func.func @transform_4(%arg0: i32) -> (i32, i32) {
    %c0_i32 = arith.constant 0 : i32
    %c0_i32_0 = arith.constant 0 : i32
    %c0_i32_1 = arith.constant 0 : i32
    return %c0_i32, %c0_i32_0 : i32, i32
  }
  func.func @transform_5(%arg0: i32) -> (i32, i32) {
    %c0_i32 = arith.constant 0 : i32
    %c0_i32_0 = arith.constant 0 : i32
    %c0_i32_1 = arith.constant 0 : i32
    return %c0_i32, %c0_i32_0 : i32, i32
  }
  func.func @transform_6(%arg0: i32) -> (i32, i32) {
    %c0_i32 = arith.constant 0 : i32
    %c0_i32_0 = arith.constant 0 : i32
    return %arg0, %c0_i32 : i32, i32
  }
}

module attributes {stable_mosaic.version = 11 : i64} {
  func.func @_ffn_add_ln_kernel(%arg0: i32, %arg1: i32, %arg2: memref<16x32xbf16, #tpu.memory_space<vmem>>, %arg3: memref<32x64xbf16, #tpu.memory_space<vmem>>, %arg4: memref<1x64xf32, #tpu.memory_space<vmem>>, %arg5: memref<64x32xbf16, #tpu.memory_space<vmem>>, %arg6: memref<1x32xf32, #tpu.memory_space<vmem>>, %arg7: memref<1x32xf32, #tpu.memory_space<vmem>>, %arg8: memref<1x32xf32, #tpu.memory_space<vmem>>, %arg9: memref<16x32xbf16, #tpu.memory_space<vmem>>, %arg10: memref<16x32xf32, #tpu.memory_space<vmem>>) attributes {dimension_semantics = [#tpu.dimension_semantics<parallel>, #tpu.dimension_semantics<arbitrary>], iteration_bounds = array<i64: 1, 1>, scalar_prefetch = 0 : i64, scratch_operands = 1 : i64, tpu.core_type = #tpu.core_type<tc>, window_params = [{transform_indices = @transform_0, window_bounds = array<i64: 16, 32>}, {transform_indices = @transform_1, window_bounds = array<i64: 32, 64>}, {transform_indices = @transform_2, window_bounds = array<i64: 1, 64>}, {transform_indices = @transform_3, window_bounds = array<i64: 64, 32>}, {pipeline_mode = #tpu.pipeline_mode<synchronous>, transform_indices = @transform_4, window_bounds = array<i64: 1, 32>}, {pipeline_mode = #tpu.pipeline_mode<synchronous>, transform_indices = @transform_5, window_bounds = array<i64: 1, 32>}, {pipeline_mode = #tpu.pipeline_mode<synchronous>, transform_indices = @transform_6, window_bounds = array<i64: 1, 32>}, {transform_indices = @transform_7, window_bounds = array<i64: 16, 32>}]} {
    %c0_i32 = arith.constant 0 : i32
    %0 = arith.cmpi eq, %arg1, %c0_i32 : i32
    %1 = arith.extui %0 : i1 to i32
    %c0_i32_0 = arith.constant 0 : i32
    %2 = arith.cmpi ne, %1, %c0_i32_0 : i32
    scf.if %2 {
      %cst_16 = arith.constant 0.000000e+00 : f32
      %20 = vector.broadcast %cst_16 : f32 to vector<16x32xf32>
      %c0_17 = arith.constant 0 : index
      %c0_18 = arith.constant 0 : index
      %21 = vector.load %arg10[%c0_17, %c0_18] : memref<16x32xf32, #tpu.memory_space<vmem>>, vector<16x32xf32>
      tpu.vector_store %arg10[%c0_17, %c0_18], %20 {strides = array<i32>} : memref<16x32xf32, #tpu.memory_space<vmem>>, vector<16x32xf32>,
    } else {
    }
    %c0 = arith.constant 0 : index
    %c0_1 = arith.constant 0 : index
    %3 = vector.load %arg2[%c0, %c0_1] : memref<16x32xbf16, #tpu.memory_space<vmem>>, vector<16x32xbf16>
    %c0_2 = arith.constant 0 : index
    %c0_3 = arith.constant 0 : index
    %4 = vector.load %arg3[%c0_2, %c0_3] : memref<32x64xbf16, #tpu.memory_space<vmem>>, vector<32x64xbf16>
    %cst = arith.constant dense<0.000000e+00> : vector<16x64xf32>
    %5 = tpu.matmul %3, %4, %cst {dimension_numbers = #tpu.dot_dimension_numbers<[1], [0], [0], [1], [0, 0, 1, 1], [], []>} : vector<16x32xbf16>, vector<32x64xbf16>, vector<16x64xf32> -> vector<16x64xf32>
    %c0_4 = arith.constant 0 : index
    %c0_5 = arith.constant 0 : index
    %6 = vector.load %arg4[%c0_4, %c0_5] : memref<1x64xf32, #tpu.memory_space<vmem>>, vector<1x64xf32>
    %7 = vector.broadcast %6 : vector<1x64xf32> to vector<16x64xf32>
    %8 = arith.addf %5, %7 : vector<16x64xf32>
    %cst_6 = arith.constant 0.000000e+00 : f32
    %9 = vector.broadcast %cst_6 : f32 to vector<16x64xf32>
    %10 = arith.maximumf %8, %9 : vector<16x64xf32>
    %c0_7 = arith.constant 0 : index
    %c0_8 = arith.constant 0 : index
    %11 = vector.load %arg10[%c0_7, %c0_8] : memref<16x32xf32, #tpu.memory_space<vmem>>, vector<16x32xf32>
    %12 = arith.truncf %10 : vector<16x64xf32> to vector<16x64xbf16>
    %c0_9 = arith.constant 0 : index
    %c0_10 = arith.constant 0 : index
    %13 = vector.load %arg5[%c0_9, %c0_10] : memref<64x32xbf16, #tpu.memory_space<vmem>>, vector<64x32xbf16>
    %cst_11 = arith.constant dense<0.000000e+00> : vector<16x32xf32>
    %14 = tpu.matmul %12, %13, %cst_11 {dimension_numbers = #tpu.dot_dimension_numbers<[1], [0], [0], [1], [0, 0, 1, 1], [], []>} : vector<16x64xbf16>, vector<64x32xbf16>, vector<16x32xf32> -> vector<16x32xf32>
    %15 = arith.addf %11, %14 : vector<16x32xf32>
    %c0_12 = arith.constant 0 : index
    %c0_13 = arith.constant 0 : index
    %16 = vector.load %arg10[%c0_12, %c0_13] : memref<16x32xf32, #tpu.memory_space<vmem>>, vector<16x32xf32>
    tpu.vector_store %arg10[%c0_12, %c0_13], %15 {strides = array<i32>} : memref<16x32xf32, #tpu.memory_space<vmem>>, vector<16x32xf32>,
    %c0_i32_14 = arith.constant 0 : i32
    %17 = arith.cmpi eq, %arg1, %c0_i32_14 : i32
    %18 = arith.extui %17 : i1 to i32
    %c0_i32_15 = arith.constant 0 : i32
    %19 = arith.cmpi ne, %18, %c0_i32_15 : i32
    scf.if %19 {
      %c0_16 = arith.constant 0 : index
      %c0_17 = arith.constant 0 : index
      %20 = vector.load %arg10[%c0_16, %c0_17] : memref<16x32xf32, #tpu.memory_space<vmem>>, vector<16x32xf32>
      %c0_18 = arith.constant 0 : index
      %c0_19 = arith.constant 0 : index
      %21 = vector.load %arg6[%c0_18, %c0_19] : memref<1x32xf32, #tpu.memory_space<vmem>>, vector<1x32xf32>
      %22 = vector.broadcast %21 : vector<1x32xf32> to vector<16x32xf32>
      %23 = arith.addf %20, %22 : vector<16x32xf32>
      %c0_20 = arith.constant 0 : index
      %c0_21 = arith.constant 0 : index
      %24 = vector.load %arg2[%c0_20, %c0_21] : memref<16x32xbf16, #tpu.memory_space<vmem>>, vector<16x32xbf16>
      %25 = arith.extf %24 : vector<16x32xbf16> to vector<16x32xf32>
      %26 = arith.addf %23, %25 : vector<16x32xf32>
      %cst_22 = arith.constant dense<0.000000e+00> : vector<16xf32>
      %27 = vector.multi_reduction <add>, %26, %cst_22 [1] : vector<16x32xf32> to vector<16xf32>
      %28 = vector.shape_cast %27 : vector<16xf32> to vector<16x1xf32>
      %29 = arith.mulf %26, %26 : vector<16x32xf32>
      %cst_23 = arith.constant dense<0.000000e+00> : vector<16xf32>
      %30 = vector.multi_reduction <add>, %29, %cst_23 [1] : vector<16x32xf32> to vector<16xf32>
      %31 = vector.shape_cast %30 : vector<16xf32> to vector<16x1xf32>
      %cst_24 = arith.constant 3.200000e+01 : f32
      %32 = vector.broadcast %cst_24 : f32 to vector<16x1xf32>
      %33 = arith.divf %28, %32 : vector<16x1xf32>
      %cst_25 = arith.constant 3.200000e+01 : f32
      %34 = vector.broadcast %cst_25 : f32 to vector<16x1xf32>
      %35 = arith.divf %31, %34 : vector<16x1xf32>
      %36 = arith.mulf %33, %33 : vector<16x1xf32>
      %37 = arith.subf %35, %36 : vector<16x1xf32>
      %cst_26 = arith.constant 0.000000e+00 : f32
      %38 = vector.broadcast %cst_26 : f32 to vector<16x1xf32>
      %39 = arith.maximumf %37, %38 : vector<16x1xf32>
      %40 = vector.broadcast %33 : vector<16x1xf32> to vector<16x32xf32>
      %41 = arith.subf %26, %40 : vector<16x32xf32>
      %cst_27 = arith.constant 9.99999974E-6 : f32
      %42 = vector.broadcast %cst_27 : f32 to vector<16x1xf32>
      %43 = arith.addf %39, %42 : vector<16x1xf32>
      %44 = math.rsqrt %43 : vector<16x1xf32>
      %45 = vector.broadcast %44 : vector<16x1xf32> to vector<16x32xf32>
      %46 = arith.mulf %41, %45 : vector<16x32xf32>
      %c0_28 = arith.constant 0 : index
      %c0_29 = arith.constant 0 : index
      %47 = vector.load %arg7[%c0_28, %c0_29] : memref<1x32xf32, #tpu.memory_space<vmem>>, vector<1x32xf32>
      %48 = vector.broadcast %47 : vector<1x32xf32> to vector<16x32xf32>
      %49 = arith.mulf %46, %48 : vector<16x32xf32>
      %c0_30 = arith.constant 0 : index
      %c0_31 = arith.constant 0 : index
      %50 = vector.load %arg8[%c0_30, %c0_31] : memref<1x32xf32, #tpu.memory_space<vmem>>, vector<1x32xf32>
      %51 = vector.broadcast %50 : vector<1x32xf32> to vector<16x32xf32>
      %52 = arith.addf %49, %51 : vector<16x32xf32>
      %53 = arith.truncf %52 : vector<16x32xf32> to vector<16x32xbf16>
      %c0_32 = arith.constant 0 : index
      %c0_33 = arith.constant 0 : index
      %54 = vector.load %arg9[%c0_32, %c0_33] : memref<16x32xbf16, #tpu.memory_space<vmem>>, vector<16x32xbf16>
      tpu.vector_store %arg9[%c0_32, %c0_33], %53 {strides = array<i32>} : memref<16x32xbf16, #tpu.memory_space<vmem>>, vector<16x32xbf16>,
    } else {
    }
    return
  }
  func.func @transform_0(%arg0: i32, %arg1: i32) -> (i32, i32) {
    %c0_i32 = arith.constant 0 : i32
    %c0_i32_0 = arith.constant 0 : i32
    return %arg0, %c0_i32 : i32, i32
  }
  func.func @transform_1(%arg0: i32, %arg1: i32) -> (i32, i32) {
    %c0_i32 = arith.constant 0 : i32
    %c0_i32_0 = arith.constant 0 : i32
    return %c0_i32, %arg1 : i32, i32
  }
  func.func @transform_2(%arg0: i32, %arg1: i32) -> (i32, i32) {
    %c0_i32 = arith.constant 0 : i32
    %c0_i32_0 = arith.constant 0 : i32
    return %c0_i32, %arg1 : i32, i32
  }
  func.func @transform_3(%arg0: i32, %arg1: i32) -> (i32, i32) {
    %c0_i32 = arith.constant 0 : i32
    %c0_i32_0 = arith.constant 0 : i32
    return %arg1, %c0_i32 : i32, i32
  }
  func.func @transform_4(%arg0: i32, %arg1: i32) -> (i32, i32) {
    %c0_i32 = arith.constant 0 : i32
    %c0_i32_0 = arith.constant 0 : i32
    %c0_i32_1 = arith.constant 0 : i32
    return %c0_i32, %c0_i32_0 : i32, i32
  }
  func.func @transform_5(%arg0: i32, %arg1: i32) -> (i32, i32) {
    %c0_i32 = arith.constant 0 : i32
    %c0_i32_0 = arith.constant 0 : i32
    %c0_i32_1 = arith.constant 0 : i32
    return %c0_i32, %c0_i32_0 : i32, i32
  }
  func.func @transform_6(%arg0: i32, %arg1: i32) -> (i32, i32) {
    %c0_i32 = arith.constant 0 : i32
    %c0_i32_0 = arith.constant 0 : i32
    %c0_i32_1 = arith.constant 0 : i32
    return %c0_i32, %c0_i32_0 : i32, i32
  }
  func.func @transform_7(%arg0: i32, %arg1: i32) -> (i32, i32) {
    %c0_i32 = arith.constant 0 : i32
    %c0_i32_0 = arith.constant 0 : i32
    return %arg0, %c0_i32 : i32, i32
  }
}

module attributes {stable_mosaic.version = 11 : i64} {
  func.func @_matmul_bias_kernel(%arg0: i32, %arg1: i32, %arg2: i32, %arg3: memref<16x32xbf16, #tpu.memory_space<vmem>>, %arg4: memref<32x32xbf16, #tpu.memory_space<vmem>>, %arg5: memref<1x32xf32, #tpu.memory_space<vmem>>, %arg6: memref<16x32xbf16, #tpu.memory_space<vmem>>, %arg7: memref<16x32xf32, #tpu.memory_space<vmem>>) attributes {dimension_semantics = [#tpu.dimension_semantics<parallel>, #tpu.dimension_semantics<parallel>, #tpu.dimension_semantics<arbitrary>], iteration_bounds = array<i64: 1, 1, 1>, scalar_prefetch = 0 : i64, scratch_operands = 1 : i64, tpu.core_type = #tpu.core_type<tc>, window_params = [{transform_indices = @transform_0, window_bounds = array<i64: 16, 32>}, {transform_indices = @transform_1, window_bounds = array<i64: 32, 32>}, {transform_indices = @transform_2, window_bounds = array<i64: 1, 32>}, {transform_indices = @transform_3, window_bounds = array<i64: 16, 32>}]} {
    %c0_i32 = arith.constant 0 : i32
    %0 = arith.cmpi eq, %arg2, %c0_i32 : i32
    %1 = arith.extui %0 : i1 to i32
    %c0_i32_0 = arith.constant 0 : i32
    %2 = arith.cmpi ne, %1, %c0_i32_0 : i32
    scf.if %2 {
      %cst_10 = arith.constant 0.000000e+00 : f32
      %12 = vector.broadcast %cst_10 : f32 to vector<16x32xf32>
      %c0_11 = arith.constant 0 : index
      %c0_12 = arith.constant 0 : index
      %13 = vector.load %arg7[%c0_11, %c0_12] : memref<16x32xf32, #tpu.memory_space<vmem>>, vector<16x32xf32>
      tpu.vector_store %arg7[%c0_11, %c0_12], %12 {strides = array<i32>} : memref<16x32xf32, #tpu.memory_space<vmem>>, vector<16x32xf32>,
    } else {
    }
    %c0 = arith.constant 0 : index
    %c0_1 = arith.constant 0 : index
    %3 = vector.load %arg7[%c0, %c0_1] : memref<16x32xf32, #tpu.memory_space<vmem>>, vector<16x32xf32>
    %c0_2 = arith.constant 0 : index
    %c0_3 = arith.constant 0 : index
    %4 = vector.load %arg3[%c0_2, %c0_3] : memref<16x32xbf16, #tpu.memory_space<vmem>>, vector<16x32xbf16>
    %c0_4 = arith.constant 0 : index
    %c0_5 = arith.constant 0 : index
    %5 = vector.load %arg4[%c0_4, %c0_5] : memref<32x32xbf16, #tpu.memory_space<vmem>>, vector<32x32xbf16>
    %cst = arith.constant dense<0.000000e+00> : vector<16x32xf32>
    %6 = tpu.matmul %4, %5, %cst {dimension_numbers = #tpu.dot_dimension_numbers<[1], [0], [0], [1], [0, 0, 1, 1], [], []>} : vector<16x32xbf16>, vector<32x32xbf16>, vector<16x32xf32> -> vector<16x32xf32>
    %7 = arith.addf %3, %6 : vector<16x32xf32>
    %c0_6 = arith.constant 0 : index
    %c0_7 = arith.constant 0 : index
    %8 = vector.load %arg7[%c0_6, %c0_7] : memref<16x32xf32, #tpu.memory_space<vmem>>, vector<16x32xf32>
    tpu.vector_store %arg7[%c0_6, %c0_7], %7 {strides = array<i32>} : memref<16x32xf32, #tpu.memory_space<vmem>>, vector<16x32xf32>,
    %c0_i32_8 = arith.constant 0 : i32
    %9 = arith.cmpi eq, %arg2, %c0_i32_8 : i32
    %10 = arith.extui %9 : i1 to i32
    %c0_i32_9 = arith.constant 0 : i32
    %11 = arith.cmpi ne, %10, %c0_i32_9 : i32
    scf.if %11 {
      %c0_10 = arith.constant 0 : index
      %c0_11 = arith.constant 0 : index
      %12 = vector.load %arg7[%c0_10, %c0_11] : memref<16x32xf32, #tpu.memory_space<vmem>>, vector<16x32xf32>
      %c0_12 = arith.constant 0 : index
      %c0_13 = arith.constant 0 : index
      %13 = vector.load %arg5[%c0_12, %c0_13] : memref<1x32xf32, #tpu.memory_space<vmem>>, vector<1x32xf32>
      %14 = vector.broadcast %13 : vector<1x32xf32> to vector<16x32xf32>
      %15 = arith.addf %12, %14 : vector<16x32xf32>
      %16 = arith.truncf %15 : vector<16x32xf32> to vector<16x32xbf16>
      %c0_14 = arith.constant 0 : index
      %c0_15 = arith.constant 0 : index
      %17 = vector.load %arg6[%c0_14, %c0_15] : memref<16x32xbf16, #tpu.memory_space<vmem>>, vector<16x32xbf16>
      tpu.vector_store %arg6[%c0_14, %c0_15], %16 {strides = array<i32>} : memref<16x32xbf16, #tpu.memory_space<vmem>>, vector<16x32xbf16>,
    } else {
    }
    return
  }
  func.func @transform_0(%arg0: i32, %arg1: i32, %arg2: i32) -> (i32, i32) {
    %c0_i32 = arith.constant 0 : i32
    return %arg0, %arg2 : i32, i32
  }
  func.func @transform_1(%arg0: i32, %arg1: i32, %arg2: i32) -> (i32, i32) {
    %c0_i32 = arith.constant 0 : i32
    return %arg2, %arg1 : i32, i32
  }
  func.func @transform_2(%arg0: i32, %arg1: i32, %arg2: i32) -> (i32, i32) {
    %c0_i32 = arith.constant 0 : i32
    %c0_i32_0 = arith.constant 0 : i32
    return %c0_i32, %arg1 : i32, i32
  }
  func.func @transform_3(%arg0: i32, %arg1: i32, %arg2: i32) -> (i32, i32) {
    %c0_i32 = arith.constant 0 : i32
    return %arg0, %arg1 : i32, i32
  }
}

module attributes {stable_mosaic.version = 11 : i64} {
  func.func @_matmul_bias_kernel(%arg0: i32, %arg1: i32, %arg2: i32, %arg3: memref<16x32xbf16, #tpu.memory_space<vmem>>, %arg4: memref<32x64xbf16, #tpu.memory_space<vmem>>, %arg5: memref<1x64xf32, #tpu.memory_space<vmem>>, %arg6: memref<16x64xf32, #tpu.memory_space<vmem>>, %arg7: memref<16x64xf32, #tpu.memory_space<vmem>>) attributes {dimension_semantics = [#tpu.dimension_semantics<parallel>, #tpu.dimension_semantics<parallel>, #tpu.dimension_semantics<arbitrary>], iteration_bounds = array<i64: 1, 1, 1>, scalar_prefetch = 0 : i64, scratch_operands = 1 : i64, tpu.core_type = #tpu.core_type<tc>, window_params = [{transform_indices = @transform_0, window_bounds = array<i64: 16, 32>}, {transform_indices = @transform_1, window_bounds = array<i64: 32, 64>}, {transform_indices = @transform_2, window_bounds = array<i64: 1, 64>}, {transform_indices = @transform_3, window_bounds = array<i64: 16, 64>}]} {
    %c0_i32 = arith.constant 0 : i32
    %0 = arith.cmpi eq, %arg2, %c0_i32 : i32
    %1 = arith.extui %0 : i1 to i32
    %c0_i32_0 = arith.constant 0 : i32
    %2 = arith.cmpi ne, %1, %c0_i32_0 : i32
    scf.if %2 {
      %cst_10 = arith.constant 0.000000e+00 : f32
      %12 = vector.broadcast %cst_10 : f32 to vector<16x64xf32>
      %c0_11 = arith.constant 0 : index
      %c0_12 = arith.constant 0 : index
      %13 = vector.load %arg7[%c0_11, %c0_12] : memref<16x64xf32, #tpu.memory_space<vmem>>, vector<16x64xf32>
      tpu.vector_store %arg7[%c0_11, %c0_12], %12 {strides = array<i32>} : memref<16x64xf32, #tpu.memory_space<vmem>>, vector<16x64xf32>,
    } else {
    }
    %c0 = arith.constant 0 : index
    %c0_1 = arith.constant 0 : index
    %3 = vector.load %arg7[%c0, %c0_1] : memref<16x64xf32, #tpu.memory_space<vmem>>, vector<16x64xf32>
    %c0_2 = arith.constant 0 : index
    %c0_3 = arith.constant 0 : index
    %4 = vector.load %arg3[%c0_2, %c0_3] : memref<16x32xbf16, #tpu.memory_space<vmem>>, vector<16x32xbf16>
    %c0_4 = arith.constant 0 : index
    %c0_5 = arith.constant 0 : index
    %5 = vector.load %arg4[%c0_4, %c0_5] : memref<32x64xbf16, #tpu.memory_space<vmem>>, vector<32x64xbf16>
    %cst = arith.constant dense<0.000000e+00> : vector<16x64xf32>
    %6 = tpu.matmul %4, %5, %cst {dimension_numbers = #tpu.dot_dimension_numbers<[1], [0], [0], [1], [0, 0, 1, 1], [], []>} : vector<16x32xbf16>, vector<32x64xbf16>, vector<16x64xf32> -> vector<16x64xf32>
    %7 = arith.addf %3, %6 : vector<16x64xf32>
    %c0_6 = arith.constant 0 : index
    %c0_7 = arith.constant 0 : index
    %8 = vector.load %arg7[%c0_6, %c0_7] : memref<16x64xf32, #tpu.memory_space<vmem>>, vector<16x64xf32>
    tpu.vector_store %arg7[%c0_6, %c0_7], %7 {strides = array<i32>} : memref<16x64xf32, #tpu.memory_space<vmem>>, vector<16x64xf32>,
    %c0_i32_8 = arith.constant 0 : i32
    %9 = arith.cmpi eq, %arg2, %c0_i32_8 : i32
    %10 = arith.extui %9 : i1 to i32
    %c0_i32_9 = arith.constant 0 : i32
    %11 = arith.cmpi ne, %10, %c0_i32_9 : i32
    scf.if %11 {
      %c0_10 = arith.constant 0 : index
      %c0_11 = arith.constant 0 : index
      %12 = vector.load %arg7[%c0_10, %c0_11] : memref<16x64xf32, #tpu.memory_space<vmem>>, vector<16x64xf32>
      %c0_12 = arith.constant 0 : index
      %c0_13 = arith.constant 0 : index
      %13 = vector.load %arg5[%c0_12, %c0_13] : memref<1x64xf32, #tpu.memory_space<vmem>>, vector<1x64xf32>
      %14 = vector.broadcast %13 : vector<1x64xf32> to vector<16x64xf32>
      %15 = arith.addf %12, %14 : vector<16x64xf32>
      %c0_14 = arith.constant 0 : index
      %c0_15 = arith.constant 0 : index
      %16 = vector.load %arg6[%c0_14, %c0_15] : memref<16x64xf32, #tpu.memory_space<vmem>>, vector<16x64xf32>
      tpu.vector_store %arg6[%c0_14, %c0_15], %15 {strides = array<i32>} : memref<16x64xf32, #tpu.memory_space<vmem>>, vector<16x64xf32>,
    } else {
    }
    return
  }
  func.func @transform_0(%arg0: i32, %arg1: i32, %arg2: i32) -> (i32, i32) {
    %c0_i32 = arith.constant 0 : i32
    return %arg0, %arg2 : i32, i32
  }
  func.func @transform_1(%arg0: i32, %arg1: i32, %arg2: i32) -> (i32, i32) {
    %c0_i32 = arith.constant 0 : i32
    return %arg2, %arg1 : i32, i32
  }
  func.func @transform_2(%arg0: i32, %arg1: i32, %arg2: i32) -> (i32, i32) {
    %c0_i32 = arith.constant 0 : i32
    %c0_i32_0 = arith.constant 0 : i32
    return %c0_i32, %arg1 : i32, i32
  }
  func.func @transform_3(%arg0: i32, %arg1: i32, %arg2: i32) -> (i32, i32) {
    %c0_i32 = arith.constant 0 : i32
    return %arg0, %arg1 : i32, i32
  }
}

module attributes {stable_mosaic.version = 11 : i64} {
  func.func @_matmul_bias_kernel(%arg0: i32, %arg1: i32, %arg2: i32, %arg3: memref<16x32xbf16, #tpu.memory_space<vmem>>, %arg4: memref<32x64xbf16, #tpu.memory_space<vmem>>, %arg5: memref<1x64xf32, #tpu.memory_space<vmem>>, %arg6: memref<16x64xbf16, #tpu.memory_space<vmem>>, %arg7: memref<16x64xf32, #tpu.memory_space<vmem>>) attributes {dimension_semantics = [#tpu.dimension_semantics<parallel>, #tpu.dimension_semantics<parallel>, #tpu.dimension_semantics<arbitrary>], iteration_bounds = array<i64: 1, 1, 1>, scalar_prefetch = 0 : i64, scratch_operands = 1 : i64, tpu.core_type = #tpu.core_type<tc>, window_params = [{transform_indices = @transform_0, window_bounds = array<i64: 16, 32>}, {transform_indices = @transform_1, window_bounds = array<i64: 32, 64>}, {transform_indices = @transform_2, window_bounds = array<i64: 1, 64>}, {transform_indices = @transform_3, window_bounds = array<i64: 16, 64>}]} {
    %c0_i32 = arith.constant 0 : i32
    %0 = arith.cmpi eq, %arg2, %c0_i32 : i32
    %1 = arith.extui %0 : i1 to i32
    %c0_i32_0 = arith.constant 0 : i32
    %2 = arith.cmpi ne, %1, %c0_i32_0 : i32
    scf.if %2 {
      %cst_10 = arith.constant 0.000000e+00 : f32
      %12 = vector.broadcast %cst_10 : f32 to vector<16x64xf32>
      %c0_11 = arith.constant 0 : index
      %c0_12 = arith.constant 0 : index
      %13 = vector.load %arg7[%c0_11, %c0_12] : memref<16x64xf32, #tpu.memory_space<vmem>>, vector<16x64xf32>
      tpu.vector_store %arg7[%c0_11, %c0_12], %12 {strides = array<i32>} : memref<16x64xf32, #tpu.memory_space<vmem>>, vector<16x64xf32>,
    } else {
    }
    %c0 = arith.constant 0 : index
    %c0_1 = arith.constant 0 : index
    %3 = vector.load %arg7[%c0, %c0_1] : memref<16x64xf32, #tpu.memory_space<vmem>>, vector<16x64xf32>
    %c0_2 = arith.constant 0 : index
    %c0_3 = arith.constant 0 : index
    %4 = vector.load %arg3[%c0_2, %c0_3] : memref<16x32xbf16, #tpu.memory_space<vmem>>, vector<16x32xbf16>
    %c0_4 = arith.constant 0 : index
    %c0_5 = arith.constant 0 : index
    %5 = vector.load %arg4[%c0_4, %c0_5] : memref<32x64xbf16, #tpu.memory_space<vmem>>, vector<32x64xbf16>
    %cst = arith.constant dense<0.000000e+00> : vector<16x64xf32>
    %6 = tpu.matmul %4, %5, %cst {dimension_numbers = #tpu.dot_dimension_numbers<[1], [0], [0], [1], [0, 0, 1, 1], [], []>} : vector<16x32xbf16>, vector<32x64xbf16>, vector<16x64xf32> -> vector<16x64xf32>
    %7 = arith.addf %3, %6 : vector<16x64xf32>
    %c0_6 = arith.constant 0 : index
    %c0_7 = arith.constant 0 : index
    %8 = vector.load %arg7[%c0_6, %c0_7] : memref<16x64xf32, #tpu.memory_space<vmem>>, vector<16x64xf32>
    tpu.vector_store %arg7[%c0_6, %c0_7], %7 {strides = array<i32>} : memref<16x64xf32, #tpu.memory_space<vmem>>, vector<16x64xf32>,
    %c0_i32_8 = arith.constant 0 : i32
    %9 = arith.cmpi eq, %arg2, %c0_i32_8 : i32
    %10 = arith.extui %9 : i1 to i32
    %c0_i32_9 = arith.constant 0 : i32
    %11 = arith.cmpi ne, %10, %c0_i32_9 : i32
    scf.if %11 {
      %c0_10 = arith.constant 0 : index
      %c0_11 = arith.constant 0 : index
      %12 = vector.load %arg7[%c0_10, %c0_11] : memref<16x64xf32, #tpu.memory_space<vmem>>, vector<16x64xf32>
      %c0_12 = arith.constant 0 : index
      %c0_13 = arith.constant 0 : index
      %13 = vector.load %arg5[%c0_12, %c0_13] : memref<1x64xf32, #tpu.memory_space<vmem>>, vector<1x64xf32>
      %14 = vector.broadcast %13 : vector<1x64xf32> to vector<16x64xf32>
      %15 = arith.addf %12, %14 : vector<16x64xf32>
      %16 = arith.truncf %15 : vector<16x64xf32> to vector<16x64xbf16>
      %c0_14 = arith.constant 0 : index
      %c0_15 = arith.constant 0 : index
      %17 = vector.load %arg6[%c0_14, %c0_15] : memref<16x64xbf16, #tpu.memory_space<vmem>>, vector<16x64xbf16>
      tpu.vector_store %arg6[%c0_14, %c0_15], %16 {strides = array<i32>} : memref<16x64xbf16, #tpu.memory_space<vmem>>, vector<16x64xbf16>,
    } else {
    }
    return
  }
  func.func @transform_0(%arg0: i32, %arg1: i32, %arg2: i32) -> (i32, i32) {
    %c0_i32 = arith.constant 0 : i32
    return %arg0, %arg2 : i32, i32
  }
  func.func @transform_1(%arg0: i32, %arg1: i32, %arg2: i32) -> (i32, i32) {
    %c0_i32 = arith.constant 0 : i32
    return %arg2, %arg1 : i32, i32
  }
  func.func @transform_2(%arg0: i32, %arg1: i32, %arg2: i32) -> (i32, i32) {
    %c0_i32 = arith.constant 0 : i32
    %c0_i32_0 = arith.constant 0 : i32
    return %c0_i32, %arg1 : i32, i32
  }
  func.func @transform_3(%arg0: i32, %arg1: i32, %arg2: i32) -> (i32, i32) {
    %c0_i32 = arith.constant 0 : i32
    return %arg0, %arg1 : i32, i32
  }
}

</mosaic_0001>

<llo_original>
// kernel: transformer_forward.27
$region0: #{transformer_forward.27}
  #allocation0 [shape = 'u32[]', space=smem, size = 0x4, offset = 0x4, fixed_abs, tag = 'smem constant byte address 0x4 - core index']
  #allocation1 [shape = 'u32[144,128]{1,0:T(1,128)}', space=vmem, size = 0x12000, scoped, tag = 'internal scratch']
  %s0 = inlined_call_operand.vmem [shape: bf16[16,32], index: 0, kind: input, shape index: {}]
  %s1 = inlined_call_operand.vmem [shape: bf16[32,32], index: 1, kind: input, shape index: {}]
  %s2 = inlined_call_operand.vmem [shape: f32[1,32], index: 2, kind: input, shape index: {}]
  %s3 = inlined_call_operand.vmem [shape: bf16[16,32], index: 3, kind: input, shape index: {}]
  %s4 = inlined_call_operand.vmem [shape: f32[1,32], index: 4, kind: input, shape index: {}]
  %s5 = inlined_call_operand.vmem [shape: f32[1,32], index: 5, kind: input, shape index: {}]
  %s6 = inlined_call_operand.vmem [shape: bf16[16,32], index: 6, kind: output, shape index: {}]
  %s7 = sld [smem:[#allocation0]]
  $region34: #{transformer_forward.27} parent=0
    _
  %s9 = ssub.s32 1, %s7
  %s10 = scalar_select 0, %s9, %s7
  // Predicated region
  $region2: #{transformer_forward.27} parent=0 // pred_check
    _
  $region3: #{transformer_forward.27} parent=0 // pred_check_branch
    %12 = sbr.rel (0) target = $region5
  $region4: #{transformer_forward.27} parent=0 // pred_region
    _
  $region5: #{transformer_forward.27} parent=0 // pred_fallthru
    _
  // Predicated region
  $region6: #{transformer_forward.27} parent=0 // pred_check
    _
  $region7: #{transformer_forward.27} parent=0 // pred_check_branch
    %14 = sbr.rel (0) target = $region9
  $region8: #{transformer_forward.27} parent=0 // pred_region
    _
  $region9: #{transformer_forward.27} parent=0 // pred_fallthru
    _
  // Predicated region
  $region10: #{transformer_forward.27} parent=0 // pred_check
    _
  $region11: #{transformer_forward.27} parent=0 // pred_check_branch
    %16 = sbr.rel (0) target = $region13
  $region12: #{transformer_forward.27} parent=0 // pred_region
    _
  $region13: #{transformer_forward.27} parent=0 // pred_fallthru
    _
  // Predicated region
  $region14: #{transformer_forward.27} parent=0 // pred_check
    _
  $region15: #{transformer_forward.27} parent=0 // pred_check_branch
    %18 = sbr.rel (0) target = $region17
  $region16: #{transformer_forward.27} parent=0 // pred_region
    _
  $region17: #{transformer_forward.27} parent=0 // pred_fallthru
    _
  // Predicated region
  $region18: #{transformer_forward.27} parent=0 // pred_check
    _
  $region19: #{transformer_forward.27} parent=0 // pred_check_branch
    %20 = sbr.rel (0) target = $region21
  $region20: #{transformer_forward.27} parent=0 // pred_region
    _
  $region21: #{transformer_forward.27} parent=0 // pred_fallthru
    _
  // Predicated region
  $region22: #{transformer_forward.27} parent=0 // pred_check
    _
  $region23: #{transformer_forward.27} parent=0 // pred_check_branch
    %22 = sbr.rel (0) target = $region25
  $region24: #{transformer_forward.27} parent=0 // pred_region
    _
  $region25: #{transformer_forward.27} parent=0 // pred_fallthru
    _
  %v24 = vld [vmem:[%s0] sm:$0xf]
  %v25 = vld [vmem:[%s0 + $0x4] sm:$0xf]
  %v26 = vld [vmem:[%s1] sm:$0xf]
  %v27 = vld [vmem:[%s1 + $0x4] sm:$0xf]
  %v28 = vld [vmem:[%s1 + $0x8] sm:$0xf]
  %v29 = vld [vmem:[%s1 + $0xc] sm:$0xf]
  %v30 = vld [vmem:[%s2] sm:$0x1]
  %v32 = vlaneseq
  %v33 = vshrl.u32 %v32, 7
  %v34 = vsub.s32 0, %v33
  %v35 = vrot.slane %v30, %v34
  %v39 = vunpack.c.l.b16 %v24
  %v40 = vunpack.c.l.b16 %v25
  %v41 = vpack.c.b16 %v40, %v39
  %v46 = vunpack.c.l.b16 %v26
  %v47 = vunpack.c.l.b16 %v27
  %v48 = vunpack.c.l.b16 %v28
  %v49 = vunpack.c.l.b16 %v29
  %v50 = vpack.c.b16 %v47, %v46
  %v51 = vpack.c.b16 %v49, %v48
  %vm54 = vcmask 261120
  %v56 = vsel %vm54, %v41, 0
  %58 = vmatprep.subr.bf16.mxu0 0
  %59 = vmatpush1.bf16.msra.mxu0 %v50
  %60 = vmatprep.subr.bf16.mxu0 0
  %61 = vmatpush1.bf16.msra.mxu0 %v51
  %62 = vmatprep.subr.bf16.mxu0 0
  %63 = vmatpush1.bf16.msra.mxu0 0
  %64 = vmatprep.subr.bf16.mxu0 0
  %65 = vmatpush1.bf16.msra.mxu0 0
  %66 = vmatprep.subr.bf16.mxu0 0
  %67 = vmatpush1.bf16.msra.mxu0 0
  %68 = vmatprep.subr.bf16.mxu0 0
  %69 = vmatpush1.bf16.msra.mxu0 0
  %70 = vmatprep.subr.bf16.mxu0 0
  %71 = vmatpush1.bf16.msra.mxu0 0
  %72 = vmatprep.subr.bf16.mxu0 0
  %73 = vmatpush1.bf16.msra.mxu0 0
  %74 = vmatprep.subr.bf16.mxu0 0
  %75 = vmatpush1.bf16.msra.mxu0 0
  %76 = vmatprep.subr.bf16.mxu0 0
  %77 = vmatpush1.bf16.msra.mxu0 0
  %78 = vmatprep.subr.bf16.mxu0 0
  %79 = vmatpush1.bf16.msra.mxu0 0
  %80 = vmatprep.subr.bf16.mxu0 0
  %81 = vmatpush1.bf16.msra.mxu0 0
  %82 = vmatprep.subr.bf16.mxu0 0
  %83 = vmatpush1.bf16.msra.mxu0 0
  %84 = vmatprep.subr.bf16.mxu0 0
  %85 = vmatpush1.bf16.msra.mxu0 0
  %86 = vmatprep.subr.bf16.mxu0 0
  %87 = vmatpush1.bf16.msra.mxu0 0
  %88 = vmatprep.subr.bf16.mxu0 0
  %89 = vmatpush1.bf16.msra.mxu0 0
  %90 = vmatprep.mubr.bf16.mxu0 0
  %91 = vmatmul.mubr.bf16.gmra.mrb[0].mxu0 %v56
  %v92 = vpop.f32.mrb[0].mxu0
  %v93 = vadd.f32 %v35, %v92
  %v94 = vpop.f32.mrb[0].mxu0
  %v95 = vpop.f32.mrb[0].mxu0
  %v96 = vadd.f32 %v35, %v95
  %v97 = vpop.f32.mrb[0].mxu0
  %98 = vdwg.mxu0
  %v99 = vld [vmem:[%s3] sm:$0xf]
  %v100 = vld [vmem:[%s3 + $0x4] sm:$0xf]
  %v101 = vunpack.c.l.bf16 %v99
  %v102 = vunpack.c.l.bf16 %v100
  %v103 = vadd.f32 %v93, %v101
  %v104 = vadd.f32 %v96, %v102
  %v105 = vsel %vm54, %v103, 0.0
  %106 = vadd.xlane.f32.xlu0 %v105
  %v107 = vpop.xlane.xlu0 %106
  %v108 = vsel %vm54, %v104, 0.0
  %109 = vadd.xlane.f32.xlu0 %v108
  %v110 = vpop.xlane.xlu0 %109
  %v111 = vmul.f32 %v103, %v103
  %v112 = vmul.f32 %v104, %v104
  %v113 = vsel %vm54, %v111, 0.0
  %114 = vadd.xlane.f32.xlu0 %v113
  %v115 = vpop.xlane.xlu0 %114
  %v116 = vsel %vm54, %v112, 0.0
  %117 = vadd.xlane.f32.xlu0 %v116
  %v118 = vpop.xlane.xlu0 %117
  %v119 = vrcp.pop 32.0
  %v120 = vmul.f32 %v107, %v119
  %v121 = vmul.f32 %v110, %v119
  %v122 = vmul.f32 %v115, %v119
  %v123 = vmul.f32 %v118, %v119
  %v124 = vmul.f32 %v120, %v120
  %v125 = vmul.f32 %v121, %v121
  %v126 = vsub.f32 %v122, %v124
  %v127 = vsub.f32 %v123, %v125
  %v128 = vmax.f32 %v126, 0.0
  %v129 = vmax.f32 %v127, 0.0
  %v130 = vsub.f32 %v103, %v120
  %v131 = vsub.f32 %v104, %v121
  %v132 = vadd.f32 %v128, 1e-05
  %v133 = vadd.f32 %v129, 1e-05
  %v134 = vrsqrt.pop %v132
  %v135 = vrsqrt.pop %v133
  %v136 = vmul.f32 %v130, %v134
  %v137 = vmul.f32 %v131, %v135
  %v138 = vld [vmem:[%s4] sm:$0x1]
  %v140 = vlaneseq
  %v141 = vshrl.u32 %v140, 7
  %v142 = vsub.s32 0, %v141
  %v143 = vrot.slane %v138, %v142
  %v145 = vmul.f32 %v136, %v143
  %v146 = vmul.f32 %v137, %v143
  %v147 = vld [vmem:[%s5] sm:$0x1]
  %v149 = vlaneseq
  %v150 = vshrl.u32 %v149, 7
  %v151 = vsub.s32 0, %v150
  %v152 = vrot.slane %v147, %v151
  %v154 = vadd.f32 %v145, %v152
  %v155 = vadd.f32 %v146, %v152
  %v156 = vpack.c.bf16 %v155, %v154
  %v158 = vunpack.c.l.b16 %v156
  %v159 = vunpack.c.h.b16 %v156
  %v160 = vpack.c.b16 %v158, %v158
  %v161 = vpack.c.b16 %v159, %v159
  %vm164 = vcmask 257024
  %165 = vst.msk [vmem:[%s6] sm:$0xf] %vm164, %v160
  %166 = vst.msk [vmem:[%s6 + $0x4] sm:$0xf] %vm164, %v161
  // Predicated region
  $region26: #{transformer_forward.27} parent=0 // pred_check
    _
  $region27: #{transformer_forward.27} parent=0 // pred_check_branch
    %168 = sbr.rel (0) target = $region29
  $region28: #{transformer_forward.27} parent=0 // pred_region
    _
  $region29: #{transformer_forward.27} parent=0 // pred_fallthru
    _
  // Predicated region
  $region30: #{transformer_forward.27} parent=0 // pred_check
    _
  $region31: #{transformer_forward.27} parent=0 // pred_check_branch
    %170 = sbr.rel (0) target = $region33
  $region32: #{transformer_forward.27} parent=0 // pred_region
    _
  $region33: #{transformer_forward.27} parent=0 // pred_fallthru
    _

// kernel: transformer_forward.28
$region0: #{transformer_forward.28}
  #allocation0 [shape = 'u32[]', space=smem, size = 0x4, offset = 0x4, fixed_abs, tag = 'smem constant byte address 0x4 - core index']
  #allocation1 [shape = 'u32[144,128]{1,0:T(1,128)}', space=vmem, size = 0x12000, scoped, tag = 'internal scratch']
  #allocation2 [shape = 'f32[16,32]{1,0:T(8,128)}', space=vmem, size = 0x2000, scoped, tag = 'scratch operand']
  %s0 = inlined_call_operand.vmem [shape: bf16[16,32], index: 0, kind: input, shape index: {}]
  %s1 = inlined_call_operand.vmem [shape: bf16[32,64], index: 1, kind: input, shape index: {}]
  %s2 = inlined_call_operand.vmem [shape: f32[1,64], index: 2, kind: input, shape index: {}]
  %s3 = inlined_call_operand.vmem [shape: bf16[64,32], index: 3, kind: input, shape index: {}]
  %s4 = inlined_call_operand.vmem [shape: f32[1,32], index: 4, kind: input, shape index: {}]
  %s5 = inlined_call_operand.vmem [shape: f32[1,32], index: 5, kind: input, shape index: {}]
  %s6 = inlined_call_operand.vmem [shape: f32[1,32], index: 6, kind: input, shape index: {}]
  %s7 = inlined_call_operand.vmem [shape: bf16[16,32], index: 7, kind: output, shape index: {}]
  %s8 = sld [smem:[#allocation0]]
  $region46: #{transformer_forward.28} parent=0
    _
  %s10 = ssub.s32 1, %s8
  %s11 = scalar_select 0, %s10, %s8
  // Predicated region
  $region2: #{transformer_forward.28} parent=0 // pred_check
    _
  $region3: #{transformer_forward.28} parent=0 // pred_check_branch
    %13 = sbr.rel (0) target = $region5
  $region4: #{transformer_forward.28} parent=0 // pred_region
    _
  $region5: #{transformer_forward.28} parent=0 // pred_fallthru
    _
  // Predicated region
  $region6: #{transformer_forward.28} parent=0 // pred_check
    _
  $region7: #{transformer_forward.28} parent=0 // pred_check_branch
    %15 = sbr.rel (0) target = $region9
  $region8: #{transformer_forward.28} parent=0 // pred_region
    _
  $region9: #{transformer_forward.28} parent=0 // pred_fallthru
    _
  // Predicated region
  $region10: #{transformer_forward.28} parent=0 // pred_check
    _
  $region11: #{transformer_forward.28} parent=0 // pred_check_branch
    %17 = sbr.rel (0) target = $region13
  $region12: #{transformer_forward.28} parent=0 // pred_region
    _
  $region13: #{transformer_forward.28} parent=0 // pred_fallthru
    _
  // Predicated region
  $region14: #{transformer_forward.28} parent=0 // pred_check
    _
  $region15: #{transformer_forward.28} parent=0 // pred_check_branch
    %19 = sbr.rel (0) target = $region17
  $region16: #{transformer_forward.28} parent=0 // pred_region
    _
  $region17: #{transformer_forward.28} parent=0 // pred_fallthru
    _
  // Predicated region
  $region18: #{transformer_forward.28} parent=0 // pred_check
    _
  $region19: #{transformer_forward.28} parent=0 // pred_check_branch
    %21 = sbr.rel (0) target = $region21
  $region20: #{transformer_forward.28} parent=0 // pred_region
    _
  $region21: #{transformer_forward.28} parent=0 // pred_fallthru
    _
  // Predicated region
  $region22: #{transformer_forward.28} parent=0 // pred_check
    _
  $region23: #{transformer_forward.28} parent=0 // pred_check_branch
    %23 = sbr.rel (0) target = $region25
  $region24: #{transformer_forward.28} parent=0 // pred_region
    _
  $region25: #{transformer_forward.28} parent=0 // pred_fallthru
    _
  // Predicated region
  $region26: #{transformer_forward.28} parent=0 // pred_check
    _
  $region27: #{transformer_forward.28} parent=0 // pred_check_branch
    %25 = sbr.rel (0) target = $region29
  $region28: #{transformer_forward.28} parent=0 // pred_region
    _
  $region29: #{transformer_forward.28} parent=0 // pred_fallthru
    _
  %p27 = scmp.eq.s32.totalorder 0, 0
  // Predicated region
  $region30: #{transformer_forward.28} parent=0 // pred_check
    %p28 = pneg %p27
  $region31: #{transformer_forward.28} parent=0 // pred_check_branch
    %30 = sbr.rel (%p28) target = $region33
  $region32: #{transformer_forward.28} parent=0 // pred_region
    %vm31 = vcmask 261120
    %32 = vst.msk [vmem:[#allocation2] sm:$0xff] %vm31, 0.0
    %33 = vst.msk [vmem:[#allocation2 + $0x8] sm:$0xff] %vm31, 0.0
  $region33: #{transformer_forward.28} parent=0 // pred_fallthru
    _
  %v34 = vld [vmem:[%s0] sm:$0xf]
  %v35 = vld [vmem:[%s0 + $0x4] sm:$0xf]
  %v36 = vld [vmem:[%s1] sm:$0xf]
  %v37 = vld [vmem:[%s1 + $0x4] sm:$0xf]
  %v38 = vld [vmem:[%s1 + $0x8] sm:$0xf]
  %v39 = vld [vmem:[%s1 + $0xc] sm:$0xf]
  %v40 = vld [vmem:[%s2] sm:$0x1]
  %v42 = vlaneseq
  %v43 = vshrl.u32 %v42, 7
  %v44 = vsub.s32 0, %v43
  %v45 = vrot.slane %v40, %v44
  %v49 = vunpack.c.l.b16 %v34
  %v50 = vunpack.c.l.b16 %v35
  %v51 = vpack.c.b16 %v50, %v49
  %v56 = vunpack.c.l.b16 %v36
  %v57 = vunpack.c.l.b16 %v37
  %v58 = vunpack.c.l.b16 %v38
  %v59 = vunpack.c.l.b16 %v39
  %v60 = vpack.c.b16 %v57, %v56
  %v61 = vpack.c.b16 %v59, %v58
  %vm64 = vcmask 261120
  %v66 = vsel %vm64, %v51, 0
  %68 = vmatprep.subr.bf16.mxu0 0
  %69 = vmatpush1.bf16.msra.mxu0 %v60
  %70 = vmatprep.subr.bf16.mxu0 0
  %71 = vmatpush1.bf16.msra.mxu0 %v61
  %72 = vmatprep.subr.bf16.mxu0 0
  %73 = vmatpush1.bf16.msra.mxu0 0
  %74 = vmatprep.subr.bf16.mxu0 0
  %75 = vmatpush1.bf16.msra.mxu0 0
  %76 = vmatprep.subr.bf16.mxu0 0
  %77 = vmatpush1.bf16.msra.mxu0 0
  %78 = vmatprep.subr.bf16.mxu0 0
  %79 = vmatpush1.bf16.msra.mxu0 0
  %80 = vmatprep.subr.bf16.mxu0 0
  %81 = vmatpush1.bf16.msra.mxu0 0
  %82 = vmatprep.subr.bf16.mxu0 0
  %83 = vmatpush1.bf16.msra.mxu0 0
  %84 = vmatprep.subr.bf16.mxu0 0
  %85 = vmatpush1.bf16.msra.mxu0 0
  %86 = vmatprep.subr.bf16.mxu0 0
  %87 = vmatpush1.bf16.msra.mxu0 0
  %88 = vmatprep.subr.bf16.mxu0 0
  %89 = vmatpush1.bf16.msra.mxu0 0
  %90 = vmatprep.subr.bf16.mxu0 0
  %91 = vmatpush1.bf16.msra.mxu0 0
  %92 = vmatprep.subr.bf16.mxu0 0
  %93 = vmatpush1.bf16.msra.mxu0 0
  %94 = vmatprep.subr.bf16.mxu0 0
  %95 = vmatpush1.bf16.msra.mxu0 0
  %96 = vmatprep.subr.bf16.mxu0 0
  %97 = vmatpush1.bf16.msra.mxu0 0
  %98 = vmatprep.subr.bf16.mxu0 0
  %99 = vmatpush1.bf16.msra.mxu0 0
  %100 = vmatprep.mubr.bf16.mxu0 0
  %101 = vmatmul.mubr.bf16.gmra.mrb[0].mxu0 %v66
  %v102 = vpop.f32.mrb[0].mxu0
  %v103 = vadd.f32 %v45, %v102
  %v104 = vpop.f32.mrb[0].mxu0
  %v105 = vpop.f32.mrb[0].mxu0
  %v106 = vadd.f32 %v45, %v105
  %v107 = vpop.f32.mrb[0].mxu0
  %108 = vdwg.mxu0
  %v109 = vmax.f32 %v103, 0.0
  %v110 = vmax.f32 %v106, 0.0
  %v111 = vld [vmem:[#allocation2] sm:$0xff]
  %v112 = vld [vmem:[#allocation2 + $0x8] sm:$0xff]
  %v113 = vpack.c.bf16 %v110, %v109
  %v114 = vld [vmem:[%s3] sm:$0xf]
  %v115 = vld [vmem:[%s3 + $0x4] sm:$0xf]
  %v116 = vld [vmem:[%s3 + $0x8] sm:$0xf]
  %v117 = vld [vmem:[%s3 + $0xc] sm:$0xf]
  %v118 = vld [vmem:[%s3 + $0x10] sm:$0xf]
  %v119 = vld [vmem:[%s3 + $0x14] sm:$0xf]
  %v120 = vld [vmem:[%s3 + $0x18] sm:$0xf]
  %v121 = vld [vmem:[%s3 + $0x1c] sm:$0xf]
  %v130 = vunpack.c.l.b16 %v114
  %v131 = vunpack.c.l.b16 %v115
  %v132 = vunpack.c.l.b16 %v116
  %v133 = vunpack.c.l.b16 %v117
  %v134 = vunpack.c.l.b16 %v118
  %v135 = vunpack.c.l.b16 %v119
  %v136 = vunpack.c.l.b16 %v120
  %v137 = vunpack.c.l.b16 %v121
  %v138 = vpack.c.b16 %v131, %v130
  %v139 = vpack.c.b16 %v133, %v132
  %v140 = vpack.c.b16 %v135, %v134
  %v141 = vpack.c.b16 %v137, %v136
  %vm146 = vcmask 523264
  %v148 = vsel %vm146, %v113, 0
  %150 = vmatprep.subr.bf16.mxu0 0
  %151 = vmatpush1.bf16.msra.mxu0 %v138
  %152 = vmatprep.subr.bf16.mxu0 0
  %153 = vmatpush1.bf16.msra.mxu0 %v139
  %154 = vmatprep.subr.bf16.mxu0 0
  %155 = vmatpush1.bf16.msra.mxu0 %v140
  %156 = vmatprep.subr.bf16.mxu0 0
  %157 = vmatpush1.bf16.msra.mxu0 %v141
  %158 = vmatprep.subr.bf16.mxu0 0
  %159 = vmatpush1.bf16.msra.mxu0 0
  %160 = vmatprep.subr.bf16.mxu0 0
  %161 = vmatpush1.bf16.msra.mxu0 0
  %162 = vmatprep.subr.bf16.mxu0 0
  %163 = vmatpush1.bf16.msra.mxu0 0
  %164 = vmatprep.subr.bf16.mxu0 0
  %165 = vmatpush1.bf16.msra.mxu0 0
  %166 = vmatprep.subr.bf16.mxu0 0
  %167 = vmatpush1.bf16.msra.mxu0 0
  %168 = vmatprep.subr.bf16.mxu0 0
  %169 = vmatpush1.bf16.msra.mxu0 0
  %170 = vmatprep.subr.bf16.mxu0 0
  %171 = vmatpush1.bf16.msra.mxu0 0
  %172 = vmatprep.subr.bf16.mxu0 0
  %173 = vmatpush1.bf16.msra.mxu0 0
  %174 = vmatprep.subr.bf16.mxu0 0
  %175 = vmatpush1.bf16.msra.mxu0 0
  %176 = vmatprep.subr.bf16.mxu0 0
  %177 = vmatpush1.bf16.msra.mxu0 0
  %178 = vmatprep.subr.bf16.mxu0 0
  %179 = vmatpush1.bf16.msra.mxu0 0
  %180 = vmatprep.subr.bf16.mxu0 0
  %181 = vmatpush1.bf16.msra.mxu0 0
  %182 = vmatprep.mubr.bf16.mxu0 0
  %183 = vmatmul.mubr.bf16.gmra.mrb[0].mxu0 %v148
  %v184 = vpop.f32.mrb[0].mxu0
  %v185 = vadd.f32 0.0, %v184
  %v186 = vpop.f32.mrb[0].mxu0
  %v187 = vpop.f32.mrb[0].mxu0
  %v188 = vadd.f32 0.0, %v187
  %v189 = vpop.f32.mrb[0].mxu0
  %190 = vdwg.mxu0
  %v191 = vadd.f32 %v111, %v185
  %v192 = vadd.f32 %v112, %v188
  %193 = vst.msk [vmem:[#allocation2] sm:$0xff] %vm64, %v191
  %194 = vst.msk [vmem:[#allocation2 + $0x8] sm:$0xff] %vm64, %v192
  // Predicated region
  $region34: #{transformer_forward.28} parent=0 // pred_check
    %p195 = pneg %p27
  $region35: #{transformer_forward.28} parent=0 // pred_check_branch
    %197 = sbr.rel (%p195) target = $region37
  $region36: #{transformer_forward.28} parent=0 // pred_region
    %v198 = vld [vmem:[#allocation2] sm:$0xff]
    %v199 = vld [vmem:[#allocation2 + $0x8] sm:$0xff]
    %v200 = vld [vmem:[%s4] sm:$0x1]
    %v202 = vlaneseq
    %v203 = vshrl.u32 %v202, 7
    %v204 = vsub.s32 0, %v203
    %v205 = vrot.slane %v200, %v204
    %v207 = vadd.f32 %v198, %v205
    %v208 = vadd.f32 %v199, %v205
    %v209 = vld [vmem:[%s0] sm:$0xf]
    %v210 = vld [vmem:[%s0 + $0x4] sm:$0xf]
    %v211 = vunpack.c.l.bf16 %v209
    %v212 = vunpack.c.l.bf16 %v210
    %v213 = vadd.f32 %v207, %v211
    %v214 = vadd.f32 %v208, %v212
    %v215 = vsel %vm64, %v213, 0.0
    %216 = vadd.xlane.f32.xlu0 %v215
    %v217 = vpop.xlane.xlu0 %216
    %v218 = vsel %vm64, %v214, 0.0
    %219 = vadd.xlane.f32.xlu0 %v218
    %v220 = vpop.xlane.xlu0 %219
    %v221 = vmul.f32 %v213, %v213
    %v222 = vmul.f32 %v214, %v214
    %v223 = vsel %vm64, %v221, 0.0
    %224 = vadd.xlane.f32.xlu0 %v223
    %v225 = vpop.xlane.xlu0 %224
    %v226 = vsel %vm64, %v222, 0.0
    %227 = vadd.xlane.f32.xlu0 %v226
    %v228 = vpop.xlane.xlu0 %227
    %v229 = vrcp.pop 32.0
    %v230 = vmul.f32 %v217, %v229
    %v231 = vmul.f32 %v220, %v229
    %v232 = vmul.f32 %v225, %v229
    %v233 = vmul.f32 %v228, %v229
    %v234 = vmul.f32 %v230, %v230
    %v235 = vmul.f32 %v231, %v231
    %v236 = vsub.f32 %v232, %v234
    %v237 = vsub.f32 %v233, %v235
    %v238 = vmax.f32 %v236, 0.0
    %v239 = vmax.f32 %v237, 0.0
    %v240 = vsub.f32 %v213, %v230
    %v241 = vsub.f32 %v214, %v231
    %v242 = vadd.f32 %v238, 1e-05
    %v243 = vadd.f32 %v239, 1e-05
    %v244 = vrsqrt.pop %v242
    %v245 = vrsqrt.pop %v243
    %v246 = vmul.f32 %v240, %v244
    %v247 = vmul.f32 %v241, %v245
    %v248 = vld [vmem:[%s5] sm:$0x1]
    %v250 = vlaneseq
    %v251 = vshrl.u32 %v250, 7
    %v252 = vsub.s32 0, %v251
    %v253 = vrot.slane %v248, %v252
    %v255 = vmul.f32 %v246, %v253
    %v256 = vmul.f32 %v247, %v253
    %v257 = vld [vmem:[%s6] sm:$0x1]
    %v259 = vlaneseq
    %v260 = vshrl.u32 %v259, 7
    %v261 = vsub.s32 0, %v260
    %v262 = vrot.slane %v257, %v261
    %v264 = vadd.f32 %v255, %v262
    %v265 = vadd.f32 %v256, %v262
    %v266 = vpack.c.bf16 %v265, %v264
    %v268 = vunpack.c.l.b16 %v266
    %v269 = vunpack.c.h.b16 %v266
    %v270 = vpack.c.b16 %v268, %v268
    %v271 = vpack.c.b16 %v269, %v269
    %vm274 = vcmask 257024
    %275 = vst.msk [vmem:[%s7] sm:$0xf] %vm274, %v270
    %276 = vst.msk [vmem:[%s7 + $0x4] sm:$0xf] %vm274, %v271
  $region37: #{transformer_forward.28} parent=0 // pred_fallthru
    _
  // Predicated region
  $region38: #{transformer_forward.28} parent=0 // pred_check
    _
  $region39: #{transformer_forward.28} parent=0 // pred_check_branch
    %278 = sbr.rel (0) target = $region41
  $region40: #{transformer_forward.28} parent=0 // pred_region
    _
  $region41: #{transformer_forward.28} parent=0 // pred_fallthru
    _
  // Predicated region
  $region42: #{transformer_forward.28} parent=0 // pred_check
    _
  $region43: #{transformer_forward.28} parent=0 // pred_check_branch
    %280 = sbr.rel (0) target = $region45
  $region44: #{transformer_forward.28} parent=0 // pred_region
    _
  $region45: #{transformer_forward.28} parent=0 // pred_fallthru
    _

// kernel: transformer_forward.25
$region0: #{transformer_forward.25}
  #allocation0 [shape = 'u32[]', space=smem, size = 0x4, offset = 0x4, fixed_abs, tag = 'smem constant byte address 0x4 - core index']
  #allocation1 [shape = 'u32[144,128]{1,0:T(1,128)}', space=vmem, size = 0x12000, scoped, tag = 'internal scratch']
  #allocation2 [shape = 'f32[16,96]{1,0:T(8,128)}', space=vmem, size = 0x2000, scoped, tag = 'scratch operand']
  %s0 = inlined_call_operand.vmem [shape: bf16[16,32], index: 0, kind: input, shape index: {}]
  %s1 = inlined_call_operand.vmem [shape: bf16[32,96], index: 1, kind: input, shape index: {}]
  %s2 = inlined_call_operand.vmem [shape: f32[1,96], index: 2, kind: input, shape index: {}]
  %s3 = inlined_call_operand.vmem [shape: bf16[16,96], index: 3, kind: output, shape index: {}]
  %s4 = sld [smem:[#allocation0]]
  $region30: #{transformer_forward.25} parent=0
    _
  %s6 = ssub.s32 1, %s4
  %s7 = scalar_select 0, %s6, %s4
  // Predicated region
  $region2: #{transformer_forward.25} parent=0 // pred_check
    _
  $region3: #{transformer_forward.25} parent=0 // pred_check_branch
    %9 = sbr.rel (0) target = $region5
  $region4: #{transformer_forward.25} parent=0 // pred_region
    _
  $region5: #{transformer_forward.25} parent=0 // pred_fallthru
    _
  // Predicated region
  $region6: #{transformer_forward.25} parent=0 // pred_check
    _
  $region7: #{transformer_forward.25} parent=0 // pred_check_branch
    %11 = sbr.rel (0) target = $region9
  $region8: #{transformer_forward.25} parent=0 // pred_region
    _
  $region9: #{transformer_forward.25} parent=0 // pred_fallthru
    _
  // Predicated region
  $region10: #{transformer_forward.25} parent=0 // pred_check
    _
  $region11: #{transformer_forward.25} parent=0 // pred_check_branch
    %13 = sbr.rel (0) target = $region13
  $region12: #{transformer_forward.25} parent=0 // pred_region
    _
  $region13: #{transformer_forward.25} parent=0 // pred_fallthru
    _
  %p15 = scmp.eq.s32.totalorder 0, 0
  // Predicated region
  $region14: #{transformer_forward.25} parent=0 // pred_check
    %p16 = pneg %p15
  $region15: #{transformer_forward.25} parent=0 // pred_check_branch
    %18 = sbr.rel (%p16) target = $region17
  $region16: #{transformer_forward.25} parent=0 // pred_region
    %vm19 = vcmask 785408
    %20 = vst.msk [vmem:[#allocation2] sm:$0xff] %vm19, 0.0
    %21 = vst.msk [vmem:[#allocation2 + $0x8] sm:$0xff] %vm19, 0.0
  $region17: #{transformer_forward.25} parent=0 // pred_fallthru
    _
  %v22 = vld [vmem:[#allocation2] sm:$0xff]
  %v23 = vld [vmem:[#allocation2 + $0x8] sm:$0xff]
  %v24 = vld [vmem:[%s0] sm:$0xf]
  %v25 = vld [vmem:[%s0 + $0x4] sm:$0xf]
  %v26 = vld [vmem:[%s1] sm:$0xf]
  %v27 = vld [vmem:[%s1 + $0x4] sm:$0xf]
  %v28 = vld [vmem:[%s1 + $0x8] sm:$0xf]
  %v29 = vld [vmem:[%s1 + $0xc] sm:$0xf]
  %v32 = vunpack.c.l.b16 %v24
  %v33 = vunpack.c.l.b16 %v25
  %v34 = vpack.c.b16 %v33, %v32
  %v39 = vunpack.c.l.b16 %v26
  %v40 = vunpack.c.l.b16 %v27
  %v41 = vunpack.c.l.b16 %v28
  %v42 = vunpack.c.l.b16 %v29
  %v43 = vpack.c.b16 %v40, %v39
  %v44 = vpack.c.b16 %v42, %v41
  %vm47 = vcmask 261120
  %v49 = vsel %vm47, %v34, 0
  %51 = vmatprep.subr.bf16.mxu0 0
  %52 = vmatpush1.bf16.msra.mxu0 %v43
  %53 = vmatprep.subr.bf16.mxu0 0
  %54 = vmatpush1.bf16.msra.mxu0 %v44
  %55 = vmatprep.subr.bf16.mxu0 0
  %56 = vmatpush1.bf16.msra.mxu0 0
  %57 = vmatprep.subr.bf16.mxu0 0
  %58 = vmatpush1.bf16.msra.mxu0 0
  %59 = vmatprep.subr.bf16.mxu0 0
  %60 = vmatpush1.bf16.msra.mxu0 0
  %61 = vmatprep.subr.bf16.mxu0 0
  %62 = vmatpush1.bf16.msra.mxu0 0
  %63 = vmatprep.subr.bf16.mxu0 0
  %64 = vmatpush1.bf16.msra.mxu0 0
  %65 = vmatprep.subr.bf16.mxu0 0
  %66 = vmatpush1.bf16.msra.mxu0 0
  %67 = vmatprep.subr.bf16.mxu0 0
  %68 = vmatpush1.bf16.msra.mxu0 0
  %69 = vmatprep.subr.bf16.mxu0 0
  %70 = vmatpush1.bf16.msra.mxu0 0
  %71 = vmatprep.subr.bf16.mxu0 0
  %72 = vmatpush1.bf16.msra.mxu0 0
  %73 = vmatprep.subr.bf16.mxu0 0
  %74 = vmatpush1.bf16.msra.mxu0 0
  %75 = vmatprep.subr.bf16.mxu0 0
  %76 = vmatpush1.bf16.msra.mxu0 0
  %77 = vmatprep.subr.bf16.mxu0 0
  %78 = vmatpush1.bf16.msra.mxu0 0
  %79 = vmatprep.subr.bf16.mxu0 0
  %80 = vmatpush1.bf16.msra.mxu0 0
  %81 = vmatprep.subr.bf16.mxu0 0
  %82 = vmatpush1.bf16.msra.mxu0 0
  %83 = vmatprep.mubr.bf16.mxu0 0
  %84 = vmatmul.mubr.bf16.gmra.mrb[0].mxu0 %v49
  %v85 = vpop.f32.mrb[0].mxu0
  %v86 = vadd.f32 0.0, %v85
  %v87 = vpop.f32.mrb[0].mxu0
  %v88 = vpop.f32.mrb[0].mxu0
  %v89 = vadd.f32 0.0, %v88
  %v90 = vpop.f32.mrb[0].mxu0
  %91 = vdwg.mxu0
  %v92 = vadd.f32 %v22, %v86
  %v93 = vadd.f32 %v23, %v89
  %vm94 = vcmask 785408
  %95 = vst.msk [vmem:[#allocation2] sm:$0xff] %vm94, %v92
  %96 = vst.msk [vmem:[#allocation2 + $0x8] sm:$0xff] %vm94, %v93
  // Predicated region
  $region18: #{transformer_forward.25} parent=0 // pred_check
    %p97 = pneg %p15
  $region19: #{transformer_forward.25} parent=0 // pred_check_branch
    %99 = sbr.rel (%p97) target = $region21
  $region20: #{transformer_forward.25} parent=0 // pred_region
    %v100 = vld [vmem:[#allocation2] sm:$0xff]
    %v101 = vld [vmem:[#allocation2 + $0x8] sm:$0xff]
    %v102 = vld [vmem:[%s2] sm:$0x1]
    %v104 = vlaneseq
    %v105 = vshrl.u32 %v104, 7
    %v106 = vsub.s32 0, %v105
    %v107 = vrot.slane %v102, %v106
    %v109 = vadd.f32 %v100, %v107
    %v110 = vadd.f32 %v101, %v107
    %v111 = vpack.c.bf16 %v110, %v109
    %v113 = vunpack.c.l.b16 %v111
    %v114 = vunpack.c.h.b16 %v111
    %v115 = vpack.c.b16 %v113, %v113
    %v116 = vpack.c.b16 %v114, %v114
    %vm119 = vcmask 781312
    %120 = vst.msk [vmem:[%s3] sm:$0xf] %vm119, %v115
    %121 = vst.msk [vmem:[%s3 + $0x4] sm:$0xf] %vm119, %v116
  $region21: #{transformer_forward.25} parent=0 // pred_fallthru
    _
  // Predicated region
  $region22: #{transformer_forward.25} parent=0 // pred_check
    _
  $region23: #{transformer_forward.25} parent=0 // pred_check_branch
    %123 = sbr.rel (0) target = $region25
  $region24: #{transformer_forward.25} parent=0 // pred_region
    _
  $region25: #{transformer_forward.25} parent=0 // pred_fallthru
    _
  // Predicated region
  $region26: #{transformer_forward.25} parent=0 // pred_check
    _
  $region27: #{transformer_forward.25} parent=0 // pred_check_branch
    %125 = sbr.rel (0) target = $region29
  $region28: #{transformer_forward.25} parent=0 // pred_region
    _
  $region29: #{transformer_forward.25} parent=0 // pred_fallthru
    _

// kernel: transformer_forward.26
$region0: #{transformer_forward.26}
  #allocation0 [shape = 'u32[]', space=smem, size = 0x4, offset = 0x4, fixed_abs, tag = 'smem constant byte address 0x4 - core index']
  #allocation1 [shape = 'u32[144,128]{1,0:T(1,128)}', space=vmem, size = 0x12000, scoped, tag = 'internal scratch']
  %s0 = inlined_call_operand.vmem [shape: bf16[2,8,32], index: 0, kind: input, shape index: {}]
  %s1 = inlined_call_operand.vmem [shape: bf16[2,8,64], index: 1, kind: input, shape index: {}]
  %s2 = inlined_call_operand.vmem [shape: bf16[2,8,8], index: 2, kind: input, shape index: {}]
  %s3 = inlined_call_operand.vmem [shape: bf16[2,8,32], index: 3, kind: output, shape index: {}]
  %s4 = sld [smem:[#allocation0]]
  $region45: #{transformer_forward.26} parent=0
    _
  %s6 = ssub.s32 1, %s4
  %s7 = scalar_select 0, %s6, %s4
  loop: start=0, step=1, limit=4
  $region2: #{transformer_forward.26} parent=0 // loop_pre_header
    _
  $region3: #{transformer_forward.26} parent=0 // loop_header
    %s9 = sphi 0, %s13
    %p10 = scmp.ge.s32.totalorder %s9, 4
    %s16 = sphi 0, %s28
    %s17 = sphi 0, %s24
    %s18 = sphi 0, %s16
    %s19 = sphi 0, %s17
    %s20 = sphi 0, %s18
    %s21 = sphi 0, %s19
    %s33 = sphi 0, %s35
    %s36 = sphi 0, %s33
    %s37 = sphi 0, %s36
    %s53 = sphi 0, %s37
    %s59 = sphi 0, %s61
    %s62 = sphi 0, %s59
    %s63 = sphi 0, %s62
    %s79 = sphi 0, %s63
    %s87 = sphi 0, %s89
    %s90 = sphi 0, %s87
    %s91 = sphi 0, %s90
    %s107 = sphi 0, %s91
    %s115 = sphi 0, %s117
    %s118 = sphi 0, %s115
    %s119 = sphi 0, %s118
    %s135 = sphi 0, %s119
  $region4: #{transformer_forward.26} parent=0 // loop_header_branch
    %12 = sbr.rel (%p10) target = $region8
  $region5: #{transformer_forward.26} parent=0 // loop_body
    %s14 = ssub.s32 %s9, 1
    %s15 = ssub.s32 %s9, 2
    %s22 = sadd.s32 1, %s17
    %p23 = scmp.ge.s32.totalorder %s22, 1
    %s24 = scalar_select %p23, 0, %s22
    %s25 = sadd.s32 1, %s16
    %s26 = scalar_select %p23, %s25, %s16
    %p27 = scmp.ge.s32.totalorder %s26, 2
    %s28 = scalar_select %p27, 0, %s26
    %s29 = ssub.s32 %s16, %s28
    %s30 = ssub.s32 %s17, %s24
    %s31 = sor.u32 %s29, %s30
    %p32 = scmp.eq.s32.totalorder %s31, 0
    %s34 = sadd.s32 %s33, 1
    %s35 = scalar_select %p32, %s33, %s34
    %p38 = pneg %p32
    %p39 = scmp.eq.s32.totalorder %s9, 1
    %p40 = por %p38, %p39
    %p41 = scmp.ne.s32.totalorder %s33, %s36
    %p42 = scmp.eq.s32.totalorder %s9, 0
    %p43 = por %p41, %p42
    %p44 = scmp.ne.s32.totalorder %s33, %s36
    %p45 = scmp.eq.s32.totalorder %s14, 1
    %p46 = por %p44, %p45
    %p47 = scmp.ne.s32.totalorder %s36, %s37
    %p48 = scmp.eq.s32.totalorder %s14, 0
    %p49 = por %p47, %p48
    %p50 = scmp.ne.s32.totalorder %s36, %s37
    %p51 = scmp.eq.s32.totalorder %s15, 1
    %p52 = por %p50, %p51
    %p54 = scmp.ne.s32.totalorder %s37, %s53
    %p55 = scmp.eq.s32.totalorder %s15, 0
    %p56 = por %p54, %p55
    %s57 = ssub.s32 %s16, %s28
    %p58 = scmp.eq.s32.totalorder %s57, 0
    %s60 = sadd.s32 %s59, 1
    %s61 = scalar_select %p58, %s59, %s60
    %p64 = pneg %p58
    %p65 = scmp.eq.s32.totalorder %s9, 1
    %p66 = por %p64, %p65
    %p67 = scmp.ne.s32.totalorder %s59, %s62
    %p68 = scmp.eq.s32.totalorder %s9, 0
    %p69 = por %p67, %p68
    %p70 = scmp.ne.s32.totalorder %s59, %s62
    %p71 = scmp.eq.s32.totalorder %s14, 1
    %p72 = por %p70, %p71
    %p73 = scmp.ne.s32.totalorder %s62, %s63
    %p74 = scmp.eq.s32.totalorder %s14, 0
    %p75 = por %p73, %p74
    %p76 = scmp.ne.s32.totalorder %s62, %s63
    %p77 = scmp.eq.s32.totalorder %s15, 1
    %p78 = por %p76, %p77
    %p80 = scmp.ne.s32.totalorder %s63, %s79
    %p81 = scmp.eq.s32.totalorder %s15, 0
    %p82 = por %p80, %p81
    %s83 = ssub.s32 %s16, %s28
    %s84 = ssub.s32 %s17, %s24
    %s85 = sor.u32 %s83, %s84
    %p86 = scmp.eq.s32.totalorder %s85, 0
    %s88 = sadd.s32 %s87, 1
    %s89 = scalar_select %p86, %s87, %s88
    %p92 = pneg %p86
    %p93 = scmp.eq.s32.totalorder %s9, 1
    %p94 = por %p92, %p93
    %p95 = scmp.ne.s32.totalorder %s87, %s90
    %p96 = scmp.eq.s32.totalorder %s9, 0
    %p97 = por %p95, %p96
    %p98 = scmp.ne.s32.totalorder %s87, %s90
    %p99 = scmp.eq.s32.totalorder %s14, 1
    %p100 = por %p98, %p99
    %p101 = scmp.ne.s32.totalorder %s90, %s91
    %p102 = scmp.eq.s32.totalorder %s14, 0
    %p103 = por %p101, %p102
    %p104 = scmp.ne.s32.totalorder %s90, %s91
    %p105 = scmp.eq.s32.totalorder %s15, 1
    %p106 = por %p104, %p105
    %p108 = scmp.ne.s32.totalorder %s91, %s107
    %p109 = scmp.eq.s32.totalorder %s15, 0
    %p110 = por %p108, %p109
    %s111 = ssub.s32 %s16, %s28
    %s112 = ssub.s32 %s17, %s24
    %s113 = sor.u32 %s111, %s112
    %p114 = scmp.eq.s32.totalorder %s113, 0
    %s116 = sadd.s32 %s115, 1
    %s117 = scalar_select %p114, %s115, %s116
    %p120 = pneg %p114
    %p121 = scmp.eq.s32.totalorder %s9, 1
    %p122 = por %p120, %p121
    %p123 = scmp.ne.s32.totalorder %s115, %s118
    %p124 = scmp.eq.s32.totalorder %s9, 0
    %p125 = por %p123, %p124
    %p126 = scmp.ne.s32.totalorder %s115, %s118
    %p127 = scmp.eq.s32.totalorder %s14, 1
    %p128 = por %p126, %p127
    %p129 = scmp.ne.s32.totalorder %s118, %s119
    %p130 = scmp.eq.s32.totalorder %s14, 0
    %p131 = por %p129, %p130
    %p132 = scmp.ne.s32.totalorder %s118, %s119
    %p133 = scmp.eq.s32.totalorder %s15, 1
    %p134 = por %p132, %p133
    %p136 = scmp.ne.s32.totalorder %s119, %s135
    %p137 = scmp.eq.s32.totalorder %s15, 0
    %p138 = por %p136, %p137
    %p139 = scmp.le.s32.totalorder 1, %s9
    %p140 = scmp.lt.s32.totalorder %s9, 3
    %p141 = pnand %p139, %p140
    %p142 = pneg %p141
    // Predicated region
    $region9: #{transformer_forward.26} parent=5 // pred_check
      _
    $region10: #{transformer_forward.26} parent=5 // pred_check_branch
      %144 = sbr.rel (%p141) target = $region12
    $region11: #{transformer_forward.26} parent=5 // pred_region
      %s145 = ssub.s32 %s9, 1
    $region12: #{transformer_forward.26} parent=5 // pred_fallthru
      _
    %p146 = scmp.lt.s32.totalorder %s9, 2
    // Predicated region
    $region13: #{transformer_forward.26} parent=5 // pred_check
      %p147 = pneg %p146
    $region14: #{transformer_forward.26} parent=5 // pred_check_branch
      %149 = sbr.rel (%p147) target = $region16
    $region15: #{transformer_forward.26} parent=5 // pred_region
      // Predicated region
      $region17: #{transformer_forward.26} parent=15 // pred_check
        %p150 = pneg %p43
      $region18: #{transformer_forward.26} parent=15 // pred_check_branch
        %152 = sbr.rel (%p150) target = $region20
      $region19: #{transformer_forward.26} parent=15 // pred_region
        %p153 = scmp.lt.s32.totalorder %s16, 1
        %s154 = scalar_select %p153, %s16, 1
        %p155 = scmp.lt.s32.totalorder %s17, 0
        %s156 = scalar_select %p155, %s17, 0
        %s157 = sadd.s32 %s156, %s154
        %s158 = smul.addr %s157, 4
        %s159 = scalar_lea.vmem %s0, %s158
      $region20: #{transformer_forward.26} parent=15 // pred_fallthru
        _
      // Predicated region
      $region21: #{transformer_forward.26} parent=15 // pred_check
        %p160 = pneg %p69
      $region22: #{transformer_forward.26} parent=15 // pred_check_branch
        %162 = sbr.rel (%p160) target = $region24
      $region23: #{transformer_forward.26} parent=15 // pred_region
        %p163 = scmp.lt.s32.totalorder %s16, 1
        %s164 = scalar_select %p163, %s16, 1
        %s165 = smul.addr %s164, 4
        %s166 = scalar_lea.vmem %s1, %s165
      $region24: #{transformer_forward.26} parent=15 // pred_fallthru
        _
      // Predicated region
      $region25: #{transformer_forward.26} parent=15 // pred_check
        %p167 = pneg %p97
      $region26: #{transformer_forward.26} parent=15 // pred_check_branch
        %169 = sbr.rel (%p167) target = $region28
      $region27: #{transformer_forward.26} parent=15 // pred_region
        %p170 = scmp.lt.s32.totalorder %s16, 1
        %s171 = scalar_select %p170, %s16, 1
        %p172 = scmp.lt.s32.totalorder %s17, 0
        %s173 = scalar_select %p172, %s17, 0
        %s174 = sadd.s32 %s173, %s171
        %s175 = smul.addr %s174, 4
        %s176 = scalar_lea.vmem %s2, %s175
      $region28: #{transformer_forward.26} parent=15 // pred_fallthru
        _
    $region16: #{transformer_forward.26} parent=5 // pred_fallthru
      _
    %p177 = scmp.le.s32.totalorder 1, %s9
    %p178 = scmp.lt.s32.totalorder %s9, 3
    %p179 = pnand %p177, %p178
    %p180 = pneg %p179
    // Predicated region
    $region29: #{transformer_forward.26} parent=5 // pred_check
      _
    $region30: #{transformer_forward.26} parent=5 // pred_check_branch
      %182 = sbr.rel (%p179) target = $region32
    $region31: #{transformer_forward.26} parent=5 // pred_region
      %s183 = ssub.s32 %s9, 1
      %p184 = scmp.lt.s32.totalorder %s18, 1
      %s185 = scalar_select %p184, %s18, 1
      %p186 = scmp.lt.s32.totalorder %s19, 0
      %s187 = scalar_select %p186, %s19, 0
      %s188 = sadd.s32 %s187, %s185
      %s189 = smul.addr %s188, 4
      %s190 = scalar_lea.vmem %s0, %s189
      %p191 = pneg %p49
      %p192 = pneg %p46
      %p193 = scmp.lt.s32.totalorder %s18, 1
      %s194 = scalar_select %p193, %s18, 1
      %s195 = smul.addr %s194, 4
      %s196 = scalar_lea.vmem %s1, %s195
      %p197 = pneg %p75
      %p198 = pneg %p72
      %p199 = scmp.lt.s32.totalorder %s18, 1
      %s200 = scalar_select %p199, %s18, 1
      %p201 = scmp.lt.s32.totalorder %s19, 0
      %s202 = scalar_select %p201, %s19, 0
      %s203 = sadd.s32 %s202, %s200
      %s204 = smul.addr %s203, 4
      %s205 = scalar_lea.vmem %s2, %s204
      %p206 = pneg %p103
      %p207 = pneg %p100
      %p208 = pneg %p131
      %p209 = pneg %p128
      %p210 = scmp.lt.s32.totalorder %s18, 1
      %s211 = scalar_select %p210, %s18, 1
      %p212 = scmp.lt.s32.totalorder %s19, 0
      %s213 = scalar_select %p212, %s19, 0
      %s214 = sadd.s32 %s213, %s211
      %s215 = smul.addr %s214, 4
      %s216 = scalar_lea.vmem %s3, %s215
      %p217 = scmp.lt.s32.totalorder %s18, 1
      %s218 = scalar_select %p217, %s18, 1
      %p219 = scmp.lt.s32.totalorder %s19, 0
      %s220 = scalar_select %p219, %s19, 0
      %s221 = sadd.s32 %s220, %s218
      %s222 = smul.addr %s221, 4
      %s223 = scalar_lea.vmem %s0, %s222
      %p224 = scmp.lt.s32.totalorder %s18, 1
      %s225 = scalar_select %p224, %s18, 1
      %s226 = smul.addr %s225, 4
      %s227 = scalar_lea.vmem %s1, %s226
      %p228 = scmp.lt.s32.totalorder %s18, 1
      %s229 = scalar_select %p228, %s18, 1
      %p230 = scmp.lt.s32.totalorder %s19, 0
      %s231 = scalar_select %p230, %s19, 0
      %s232 = sadd.s32 %s231, %s229
      %s233 = smul.addr %s232, 4
      %s234 = scalar_lea.vmem %s2, %s233
      %p235 = scmp.lt.s32.totalorder %s18, 1
      %s236 = scalar_select %p235, %s18, 1
      %p237 = scmp.lt.s32.totalorder %s19, 0
      %s238 = scalar_select %p237, %s19, 0
      %s239 = sadd.s32 %s238, %s236
      %s240 = smul.addr %s239, 4
      %s241 = scalar_lea.vmem %s3, %s240
      %v243 = vld [vmem:[%s223] sm:$0xf]
      %v244 = vld [vmem:[%s227] sm:$0xf]
      %v245 = vld [vmem:[%s234] sm:$0xf]
      %v246 = vunpack.c.l.bf16 %v245
      %vm247 = vcmask 64512
      %v249 = vsel %vm247, %v243, 0
      %v252 = vsel %vm247, %v244, 0
      %254 = vmatprep.subr.bf16.mxu0 0
      %255 = vmatpush1.bf16.xpose.msra.mxu0 %v252
      %256 = vmatprep.subr.bf16.mxu0 0
      %257 = vmatpush1.bf16.xpose.msra.mxu0 0
      %258 = vmatprep.subr.bf16.mxu0 0
      %259 = vmatpush1.bf16.xpose.msra.mxu0 0
      %260 = vmatprep.subr.bf16.mxu0 0
      %261 = vmatpush1.bf16.xpose.msra.mxu0 0
      %262 = vmatprep.subr.bf16.mxu0 0
      %263 = vmatpush1.bf16.xpose.msra.mxu0 0
      %264 = vmatprep.subr.bf16.mxu0 0
      %265 = vmatpush1.bf16.xpose.msra.mxu0 0
      %266 = vmatprep.subr.bf16.mxu0 0
      %267 = vmatpush1.bf16.xpose.msra.mxu0 0
      %268 = vmatprep.subr.bf16.mxu0 0
      %269 = vmatpush1.bf16.xpose.msra.mxu0 0
      %270 = vmatprep.subr.bf16.mxu0 0
      %271 = vmatpush1.bf16.xpose.msra.mxu0 0
      %272 = vmatprep.subr.bf16.mxu0 0
      %273 = vmatpush1.bf16.xpose.msra.mxu0 0
      %274 = vmatprep.subr.bf16.mxu0 0
      %275 = vmatpush1.bf16.xpose.msra.mxu0 0
      %276 = vmatprep.subr.bf16.mxu0 0
      %277 = vmatpush1.bf16.xpose.msra.mxu0 0
      %278 = vmatprep.subr.bf16.mxu0 0
      %279 = vmatpush1.bf16.xpose.msra.mxu0 0
      %280 = vmatprep.subr.bf16.mxu0 0
      %281 = vmatpush1.bf16.xpose.msra.mxu0 0
      %282 = vmatprep.subr.bf16.mxu0 0
      %283 = vmatpush1.bf16.xpose.msra.mxu0 0
      %284 = vmatprep.subr.bf16.mxu0 0
      %285 = vmatpush1.bf16.xpose.msra.mxu0 0
      %286 = vmatprep.mubr.bf16.mxu0 0
      %287 = vmatmul.mubr.bf16.gmra.mrb[0].mxu0 %v249
      %v288 = vpop.f32.mrb[0].mxu0
      %v289 = vadd.f32 %v246, %v288
      %v290 = vpop.f32.mrb[0].mxu0
      %v291 = vpop.f32.mrb[0].mxu0
      %v292 = vpop.f32.mrb[0].mxu0
      %293 = vdwg.mxu0
      %v294 = vsel %vm247, %v289, -inf
      %295 = vmax.xlane.f32.xlu0 %v294
      %v296 = vpop.xlane.xlu0 %295
      %v297 = vsub.f32 %v289, %v296
      %v298 = vmul.f32 %v297, 1.442695
      %v299 = vpow.pop %v298
      %v300 = vsel %vm247, %v299, 0.0
      %301 = vadd.xlane.f32.xlu0 %v300
      %v302 = vpop.xlane.xlu0 %301
      %v303 = vrcp.pop %v302
      %v304 = vmul.f32 %v299, %v303
      %v305 = vpack.c.bf16 %v304, %v304
      %v307 = vunpack.c.l.b16 %v244
      %v308 = vpack.c.b16 %v307, %v307
      %309 = vrot.lane.b32.xlu0 %v308, 96
      %v310 = vpop.permute.xlu0 %309
      %v312 = vsel %vm247, %v305, 0
      %vm314 = vcmask 1043456
      %v316 = vsel %vm314, %v310, 0
      %318 = vmatprep.subr.bf16.mxu0 0
      %319 = vmatpush1.bf16.msra.mxu0 %v316
      %320 = vmatprep.subr.bf16.mxu0 0
      %321 = vmatpush1.bf16.msra.mxu0 0
      %322 = vmatprep.subr.bf16.mxu0 0
      %323 = vmatpush1.bf16.msra.mxu0 0
      %324 = vmatprep.subr.bf16.mxu0 0
      %325 = vmatpush1.bf16.msra.mxu0 0
      %326 = vmatprep.subr.bf16.mxu0 0
      %327 = vmatpush1.bf16.msra.mxu0 0
      %328 = vmatprep.subr.bf16.mxu0 0
      %329 = vmatpush1.bf16.msra.mxu0 0
      %330 = vmatprep.subr.bf16.mxu0 0
      %331 = vmatpush1.bf16.msra.mxu0 0
      %332 = vmatprep.subr.bf16.mxu0 0
      %333 = vmatpush1.bf16.msra.mxu0 0
      %334 = vmatprep.subr.bf16.mxu0 0
      %335 = vmatpush1.bf16.msra.mxu0 0
      %336 = vmatprep.subr.bf16.mxu0 0
      %337 = vmatpush1.bf16.msra.mxu0 0
      %338 = vmatprep.subr.bf16.mxu0 0
      %339 = vmatpush1.bf16.msra.mxu0 0
      %340 = vmatprep.subr.bf16.mxu0 0
      %341 = vmatpush1.bf16.msra.mxu0 0
      %342 = vmatprep.subr.bf16.mxu0 0
      %343 = vmatpush1.bf16.msra.mxu0 0
      %344 = vmatprep.subr.bf16.mxu0 0
      %345 = vmatpush1.bf16.msra.mxu0 0
      %346 = vmatprep.subr.bf16.mxu0 0
      %347 = vmatpush1.bf16.msra.mxu0 0
      %348 = vmatprep.subr.bf16.mxu0 0
      %349 = vmatpush1.bf16.msra.mxu0 0
      %350 = vmatprep.mubr.bf16.mxu0 0
      %351 = vmatmul.mubr.bf16.gmra.mrb[0].mxu0 %v312
      %v352 = vpop.f32.mrb[0].mxu0
      %v353 = vadd.f32 0.0, %v352
      %v354 = vpop.f32.mrb[0].mxu0
      %v355 = vpop.f32.mrb[0].mxu0
      %v356 = vpop.f32.mrb[0].mxu0
      %357 = vdwg.mxu0
      %v358 = vpack.c.bf16 %v353, %v353
      %vm359 = vcmask 60416
      %360 = vst.msk [vmem:[%s241] sm:$0xf] %vm359, %v358
      %v362 = vunpack.c.l.b16 %v243
      %v363 = vpack.c.b16 %v362, %v362
      %364 = vrot.lane.b32.xlu0 %v363, 120
      %v365 = vpop.permute.xlu0 %364
      %366 = vrot.lane.b32.xlu0 %v308, 120
      %v367 = vpop.permute.xlu0 %366
      %v369 = vsel %vm247, %v365, 0
      %v372 = vsel %vm247, %v367, 0
      %374 = vmatprep.subr.bf16.mxu0 0
      %375 = vmatpush1.bf16.xpose.msra.mxu0 %v372
      %376 = vmatprep.subr.bf16.mxu0 0
      %377 = vmatpush1.bf16.xpose.msra.mxu0 0
      %378 = vmatprep.subr.bf16.mxu0 0
      %379 = vmatpush1.bf16.xpose.msra.mxu0 0
      %380 = vmatprep.subr.bf16.mxu0 0
      %381 = vmatpush1.bf16.xpose.msra.mxu0 0
      %382 = vmatprep.subr.bf16.mxu0 0
      %383 = vmatpush1.bf16.xpose.msra.mxu0 0
      %384 = vmatprep.subr.bf16.mxu0 0
      %385 = vmatpush1.bf16.xpose.msra.mxu0 0
      %386 = vmatprep.subr.bf16.mxu0 0
      %387 = vmatpush1.bf16.xpose.msra.mxu0 0
      %388 = vmatprep.subr.bf16.mxu0 0
      %389 = vmatpush1.bf16.xpose.msra.mxu0 0
      %390 = vmatprep.subr.bf16.mxu0 0
      %391 = vmatpush1.bf16.xpose.msra.mxu0 0
      %392 = vmatprep.subr.bf16.mxu0 0
      %393 = vmatpush1.bf16.xpose.msra.mxu0 0
      %394 = vmatprep.subr.bf16.mxu0 0
      %395 = vmatpush1.bf16.xpose.msra.mxu0 0
      %396 = vmatprep.subr.bf16.mxu0 0
      %397 = vmatpush1.bf16.xpose.msra.mxu0 0
      %398 = vmatprep.subr.bf16.mxu0 0
      %399 = vmatpush1.bf16.xpose.msra.mxu0 0
      %400 = vmatprep.subr.bf16.mxu0 0
      %401 = vmatpush1.bf16.xpose.msra.mxu0 0
      %402 = vmatprep.subr.bf16.mxu0 0
      %403 = vmatpush1.bf16.xpose.msra.mxu0 0
      %404 = vmatprep.subr.bf16.mxu0 0
      %405 = vmatpush1.bf16.xpose.msra.mxu0 0
      %406 = vmatprep.mubr.bf16.mxu0 0
      %407 = vmatmul.mubr.bf16.gmra.mrb[0].mxu0 %v369
      %v408 = vpop.f32.mrb[0].mxu0
      %v409 = vadd.f32 %v246, %v408
      %v410 = vpop.f32.mrb[0].mxu0
      %v411 = vpop.f32.mrb[0].mxu0
      %v412 = vpop.f32.mrb[0].mxu0
      %413 = vdwg.mxu0
      %v414 = vsel %vm247, %v409, -inf
      %415 = vmax.xlane.f32.xlu0 %v414
      %v416 = vpop.xlane.xlu0 %415
      %v417 = vsub.f32 %v409, %v416
      %v418 = vmul.f32 %v417, 1.442695
      %v419 = vpow.pop %v418
      %v420 = vsel %vm247, %v419, 0.0
      %421 = vadd.xlane.f32.xlu0 %v420
      %v422 = vpop.xlane.xlu0 %421
      %v423 = vrcp.pop %v422
      %v424 = vmul.f32 %v419, %v423
      %v425 = vpack.c.bf16 %v424, %v424
      %426 = vrot.lane.b32.xlu0 %v308, 88
      %v427 = vpop.permute.xlu0 %426
      %v429 = vsel %vm247, %v425, 0
      %v432 = vsel %vm314, %v427, 0
      %434 = vmatprep.subr.bf16.mxu0 0
      %435 = vmatpush1.bf16.msra.mxu0 %v432
      %436 = vmatprep.subr.bf16.mxu0 0
      %437 = vmatpush1.bf16.msra.mxu0 0
      %438 = vmatprep.subr.bf16.mxu0 0
      %439 = vmatpush1.bf16.msra.mxu0 0
      %440 = vmatprep.subr.bf16.mxu0 0
      %441 = vmatpush1.bf16.msra.mxu0 0
      %442 = vmatprep.subr.bf16.mxu0 0
      %443 = vmatpush1.bf16.msra.mxu0 0
      %444 = vmatprep.subr.bf16.mxu0 0
      %445 = vmatpush1.bf16.msra.mxu0 0
      %446 = vmatprep.subr.bf16.mxu0 0
      %447 = vmatpush1.bf16.msra.mxu0 0
      %448 = vmatprep.subr.bf16.mxu0 0
      %449 = vmatpush1.bf16.msra.mxu0 0
      %450 = vmatprep.subr.bf16.mxu0 0
      %451 = vmatpush1.bf16.msra.mxu0 0
      %452 = vmatprep.subr.bf16.mxu0 0
      %453 = vmatpush1.bf16.msra.mxu0 0
      %454 = vmatprep.subr.bf16.mxu0 0
      %455 = vmatpush1.bf16.msra.mxu0 0
      %456 = vmatprep.subr.bf16.mxu0 0
      %457 = vmatpush1.bf16.msra.mxu0 0
      %458 = vmatprep.subr.bf16.mxu0 0
      %459 = vmatpush1.bf16.msra.mxu0 0
      %460 = vmatprep.subr.bf16.mxu0 0
      %461 = vmatpush1.bf16.msra.mxu0 0
      %462 = vmatprep.subr.bf16.mxu0 0
      %463 = vmatpush1.bf16.msra.mxu0 0
      %464 = vmatprep.subr.bf16.mxu0 0
      %465 = vmatpush1.bf16.msra.mxu0 0
      %466 = vmatprep.mubr.bf16.mxu0 0
      %467 = vmatmul.mubr.bf16.gmra.mrb[0].mxu0 %v429
      %v468 = vpop.f32.mrb[0].mxu0
      %v469 = vadd.f32 0.0, %v468
      %v470 = vpop.f32.mrb[0].mxu0
      %v471 = vpop.f32.mrb[0].mxu0
      %v472 = vpop.f32.mrb[0].mxu0
      %473 = vdwg.mxu0
      %v474 = vpack.c.bf16 %v469, %v469
      %v476 = vunpack.c.l.b16 %v474
      %v477 = vpack.c.b16 %v476, %v476
      %478 = vrot.lane.b32.xlu0 %v477, 8
      %v479 = vpop.permute.xlu0 %478
      %vm481 = vcmask 126016
      %482 = vst.msk [vmem:[%s241] sm:$0xf] %vm481, %v479
      %483 = vrot.lane.b32.xlu0 %v363, 112
      %v484 = vpop.permute.xlu0 %483
      %485 = vrot.lane.b32.xlu0 %v308, 112
      %v486 = vpop.permute.xlu0 %485
      %v488 = vsel %vm247, %v484, 0
      %v491 = vsel %vm247, %v486, 0
      %493 = vmatprep.subr.bf16.mxu0 0
      %494 = vmatpush1.bf16.xpose.msra.mxu0 %v491
      %495 = vmatprep.subr.bf16.mxu0 0
      %496 = vmatpush1.bf16.xpose.msra.mxu0 0
      %497 = vmatprep.subr.bf16.mxu0 0
      %498 = vmatpush1.bf16.xpose.msra.mxu0 0
      %499 = vmatprep.subr.bf16.mxu0 0
      %500 = vmatpush1.bf16.xpose.msra.mxu0 0
      %501 = vmatprep.subr.bf16.mxu0 0
      %502 = vmatpush1.bf16.xpose.msra.mxu0 0
      %503 = vmatprep.subr.bf16.mxu0 0
      %504 = vmatpush1.bf16.xpose.msra.mxu0 0
      %505 = vmatprep.subr.bf16.mxu0 0
      %506 = vmatpush1.bf16.xpose.msra.mxu0 0
      %507 = vmatprep.subr.bf16.mxu0 0
      %508 = vmatpush1.bf16.xpose.msra.mxu0 0
      %509 = vmatprep.subr.bf16.mxu0 0
      %510 = vmatpush1.bf16.xpose.msra.mxu0 0
      %511 = vmatprep.subr.bf16.mxu0 0
      %512 = vmatpush1.bf16.xpose.msra.mxu0 0
      %513 = vmatprep.subr.bf16.mxu0 0
      %514 = vmatpush1.bf16.xpose.msra.mxu0 0
      %515 = vmatprep.subr.bf16.mxu0 0
      %516 = vmatpush1.bf16.xpose.msra.mxu0 0
      %517 = vmatprep.subr.bf16.mxu0 0
      %518 = vmatpush1.bf16.xpose.msra.mxu0 0
      %519 = vmatprep.subr.bf16.mxu0 0
      %520 = vmatpush1.bf16.xpose.msra.mxu0 0
      %521 = vmatprep.subr.bf16.mxu0 0
      %522 = vmatpush1.bf16.xpose.msra.mxu0 0
      %523 = vmatprep.subr.bf16.mxu0 0
      %524 = vmatpush1.bf16.xpose.msra.mxu0 0
      %525 = vmatprep.mubr.bf16.mxu0 0
      %526 = vmatmul.mubr.bf16.gmra.mrb[0].mxu0 %v488
      %v527 = vpop.f32.mrb[0].mxu0
      %v528 = vadd.f32 %v246, %v527
      %v529 = vpop.f32.mrb[0].mxu0
      %v530 = vpop.f32.mrb[0].mxu0
      %v531 = vpop.f32.mrb[0].mxu0
      %532 = vdwg.mxu0
      %v533 = vsel %vm247, %v528, -inf
      %534 = vmax.xlane.f32.xlu0 %v533
      %v535 = vpop.xlane.xlu0 %534
      %v536 = vsub.f32 %v528, %v535
      %v537 = vmul.f32 %v536, 1.442695
      %v538 = vpow.pop %v537
      %v539 = vsel %vm247, %v538, 0.0
      %540 = vadd.xlane.f32.xlu0 %v539
      %v541 = vpop.xlane.xlu0 %540
      %v542 = vrcp.pop %v541
      %v543 = vmul.f32 %v538, %v542
      %v544 = vpack.c.bf16 %v543, %v543
      %545 = vrot.lane.b32.xlu0 %v308, 80
      %v546 = vpop.permute.xlu0 %545
      %v548 = vsel %vm247, %v544, 0
      %v551 = vsel %vm314, %v546, 0
      %553 = vmatprep.subr.bf16.mxu0 0
      %554 = vmatpush1.bf16.msra.mxu0 %v551
      %555 = vmatprep.subr.bf16.mxu0 0
      %556 = vmatpush1.bf16.msra.mxu0 0
      %557 = vmatprep.subr.bf16.mxu0 0
      %558 = vmatpush1.bf16.msra.mxu0 0
      %559 = vmatprep.subr.bf16.mxu0 0
      %560 = vmatpush1.bf16.msra.mxu0 0
      %561 = vmatprep.subr.bf16.mxu0 0
      %562 = vmatpush1.bf16.msra.mxu0 0
      %563 = vmatprep.subr.bf16.mxu0 0
      %564 = vmatpush1.bf16.msra.mxu0 0
      %565 = vmatprep.subr.bf16.mxu0 0
      %566 = vmatpush1.bf16.msra.mxu0 0
      %567 = vmatprep.subr.bf16.mxu0 0
      %568 = vmatpush1.bf16.msra.mxu0 0
      %569 = vmatprep.subr.bf16.mxu0 0
      %570 = vmatpush1.bf16.msra.mxu0 0
      %571 = vmatprep.subr.bf16.mxu0 0
      %572 = vmatpush1.bf16.msra.mxu0 0
      %573 = vmatprep.subr.bf16.mxu0 0
      %574 = vmatpush1.bf16.msra.mxu0 0
      %575 = vmatprep.subr.bf16.mxu0 0
      %576 = vmatpush1.bf16.msra.mxu0 0
      %577 = vmatprep.subr.bf16.mxu0 0
      %578 = vmatpush1.bf16.msra.mxu0 0
      %579 = vmatprep.subr.bf16.mxu0 0
      %580 = vmatpush1.bf16.msra.mxu0 0
      %581 = vmatprep.subr.bf16.mxu0 0
      %582 = vmatpush1.bf16.msra.mxu0 0
      %583 = vmatprep.subr.bf16.mxu0 0
      %584 = vmatpush1.bf16.msra.mxu0 0
      %585 = vmatprep.mubr.bf16.mxu0 0
      %586 = vmatmul.mubr.bf16.gmra.mrb[0].mxu0 %v548
      %v587 = vpop.f32.mrb[0].mxu0
      %v588 = vadd.f32 0.0, %v587
      %v589 = vpop.f32.mrb[0].mxu0
      %v590 = vpop.f32.mrb[0].mxu0
      %v591 = vpop.f32.mrb[0].mxu0
      %592 = vdwg.mxu0
      %v593 = vpack.c.bf16 %v588, %v588
      %v595 = vunpack.c.l.b16 %v593
      %v596 = vpack.c.b16 %v595, %v595
      %597 = vrot.lane.b32.xlu0 %v596, 16
      %v598 = vpop.permute.xlu0 %597
      %vm600 = vcmask 191616
      %601 = vst.msk [vmem:[%s241] sm:$0xf] %vm600, %v598
      %602 = vrot.lane.b32.xlu0 %v363, 104
      %v603 = vpop.permute.xlu0 %602
      %604 = vrot.lane.b32.xlu0 %v308, 104
      %v605 = vpop.permute.xlu0 %604
      %v607 = vsel %vm247, %v603, 0
      %v610 = vsel %vm247, %v605, 0
      %612 = vmatprep.subr.bf16.mxu0 0
      %613 = vmatpush1.bf16.xpose.msra.mxu0 %v610
      %614 = vmatprep.subr.bf16.mxu0 0
      %615 = vmatpush1.bf16.xpose.msra.mxu0 0
      %616 = vmatprep.subr.bf16.mxu0 0
      %617 = vmatpush1.bf16.xpose.msra.mxu0 0
      %618 = vmatprep.subr.bf16.mxu0 0
      %619 = vmatpush1.bf16.xpose.msra.mxu0 0
      %620 = vmatprep.subr.bf16.mxu0 0
      %621 = vmatpush1.bf16.xpose.msra.mxu0 0
      %622 = vmatprep.subr.bf16.mxu0 0
      %623 = vmatpush1.bf16.xpose.msra.mxu0 0
      %624 = vmatprep.subr.bf16.mxu0 0
      %625 = vmatpush1.bf16.xpose.msra.mxu0 0
      %626 = vmatprep.subr.bf16.mxu0 0
      %627 = vmatpush1.bf16.xpose.msra.mxu0 0
      %628 = vmatprep.subr.bf16.mxu0 0
      %629 = vmatpush1.bf16.xpose.msra.mxu0 0
      %630 = vmatprep.subr.bf16.mxu0 0
      %631 = vmatpush1.bf16.xpose.msra.mxu0 0
      %632 = vmatprep.subr.bf16.mxu0 0
      %633 = vmatpush1.bf16.xpose.msra.mxu0 0
      %634 = vmatprep.subr.bf16.mxu0 0
      %635 = vmatpush1.bf16.xpose.msra.mxu0 0
      %636 = vmatprep.subr.bf16.mxu0 0
      %637 = vmatpush1.bf16.xpose.msra.mxu0 0
      %638 = vmatprep.subr.bf16.mxu0 0
      %639 = vmatpush1.bf16.xpose.msra.mxu0 0
      %640 = vmatprep.subr.bf16.mxu0 0
      %641 = vmatpush1.bf16.xpose.msra.mxu0 0
      %642 = vmatprep.subr.bf16.mxu0 0
      %643 = vmatpush1.bf16.xpose.msra.mxu0 0
      %644 = vmatprep.mubr.bf16.mxu0 0
      %645 = vmatmul.mubr.bf16.gmra.mrb[0].mxu0 %v607
      %v646 = vpop.f32.mrb[0].mxu0
      %v647 = vadd.f32 %v246, %v646
      %v648 = vpop.f32.mrb[0].mxu0
      %v649 = vpop.f32.mrb[0].mxu0
      %v650 = vpop.f32.mrb[0].mxu0
      %651 = vdwg.mxu0
      %v652 = vsel %vm247, %v647, -inf
      %653 = vmax.xlane.f32.xlu0 %v652
      %v654 = vpop.xlane.xlu0 %653
      %v655 = vsub.f32 %v647, %v654
      %v656 = vmul.f32 %v655, 1.442695
      %v657 = vpow.pop %v656
      %v658 = vsel %vm247, %v657, 0.0
      %659 = vadd.xlane.f32.xlu0 %v658
      %v660 = vpop.xlane.xlu0 %659
      %v661 = vrcp.pop %v660
      %v662 = vmul.f32 %v657, %v661
      %v663 = vpack.c.bf16 %v662, %v662
      %664 = vrot.lane.b32.xlu0 %v308, 72
      %v665 = vpop.permute.xlu0 %664
      %v667 = vsel %vm247, %v663, 0
      %v670 = vsel %vm314, %v665, 0
      %672 = vmatprep.subr.bf16.mxu0 0
      %673 = vmatpush1.bf16.msra.mxu0 %v670
      %674 = vmatprep.subr.bf16.mxu0 0
      %675 = vmatpush1.bf16.msra.mxu0 0
      %676 = vmatprep.subr.bf16.mxu0 0
      %677 = vmatpush1.bf16.msra.mxu0 0
      %678 = vmatprep.subr.bf16.mxu0 0
      %679 = vmatpush1.bf16.msra.mxu0 0
      %680 = vmatprep.subr.bf16.mxu0 0
      %681 = vmatpush1.bf16.msra.mxu0 0
      %682 = vmatprep.subr.bf16.mxu0 0
      %683 = vmatpush1.bf16.msra.mxu0 0
      %684 = vmatprep.subr.bf16.mxu0 0
      %685 = vmatpush1.bf16.msra.mxu0 0
      %686 = vmatprep.subr.bf16.mxu0 0
      %687 = vmatpush1.bf16.msra.mxu0 0
      %688 = vmatprep.subr.bf16.mxu0 0
      %689 = vmatpush1.bf16.msra.mxu0 0
      %690 = vmatprep.subr.bf16.mxu0 0
      %691 = vmatpush1.bf16.msra.mxu0 0
      %692 = vmatprep.subr.bf16.mxu0 0
      %693 = vmatpush1.bf16.msra.mxu0 0
      %694 = vmatprep.subr.bf16.mxu0 0
      %695 = vmatpush1.bf16.msra.mxu0 0
      %696 = vmatprep.subr.bf16.mxu0 0
      %697 = vmatpush1.bf16.msra.mxu0 0
      %698 = vmatprep.subr.bf16.mxu0 0
      %699 = vmatpush1.bf16.msra.mxu0 0
      %700 = vmatprep.subr.bf16.mxu0 0
      %701 = vmatpush1.bf16.msra.mxu0 0
      %702 = vmatprep.subr.bf16.mxu0 0
      %703 = vmatpush1.bf16.msra.mxu0 0
      %704 = vmatprep.mubr.bf16.mxu0 0
      %705 = vmatmul.mubr.bf16.gmra.mrb[0].mxu0 %v667
      %v706 = vpop.f32.mrb[0].mxu0
      %v707 = vadd.f32 0.0, %v706
      %v708 = vpop.f32.mrb[0].mxu0
      %v709 = vpop.f32.mrb[0].mxu0
      %v710 = vpop.f32.mrb[0].mxu0
      %711 = vdwg.mxu0
      %v712 = vpack.c.bf16 %v707, %v707
      %v714 = vunpack.c.l.b16 %v712
      %v715 = vpack.c.b16 %v714, %v714
      %716 = vrot.lane.b32.xlu0 %v715, 24
      %v717 = vpop.permute.xlu0 %716
      %vm719 = vcmask 257216
      %720 = vst.msk [vmem:[%s241] sm:$0xf] %vm719, %v717
      %p721 = scmp.lt.s32.totalorder %s18, 1
      %s722 = scalar_select %p721, %s18, 1
      %p723 = scmp.lt.s32.totalorder %s19, 0
      %s724 = scalar_select %p723, %s19, 0
      %s725 = sadd.s32 %s724, %s722
      %s726 = smul.addr %s725, 4
      %s727 = scalar_lea.vmem %s3, %s726
      // Predicated region
      $region33: #{transformer_forward.26} parent=31 // pred_check
        %p728 = pneg %p128
      $region34: #{transformer_forward.26} parent=31 // pred_check_branch
        %730 = sbr.rel (%p728) target = $region36
      $region35: #{transformer_forward.26} parent=31 // pred_region
        _
      $region36: #{transformer_forward.26} parent=31 // pred_fallthru
        _
    $region32: #{transformer_forward.26} parent=5 // pred_fallthru
      _
    %p731 = scmp.le.s32.totalorder 2, %s9
    // Predicated region
    $region37: #{transformer_forward.26} parent=5 // pred_check
      %p732 = pneg %p731
    $region38: #{transformer_forward.26} parent=5 // pred_check_branch
      %734 = sbr.rel (%p732) target = $region40
    $region39: #{transformer_forward.26} parent=5 // pred_region
      %s735 = ssub.s32 %s9, 2
      // Predicated region
      $region41: #{transformer_forward.26} parent=39 // pred_check
        %p736 = pneg %p134
      $region42: #{transformer_forward.26} parent=39 // pred_check_branch
        %738 = sbr.rel (%p736) target = $region44
      $region43: #{transformer_forward.26} parent=39 // pred_region
        %p739 = scmp.lt.s32.totalorder %s20, 1
        %s740 = scalar_select %p739, %s20, 1
        %p741 = scmp.lt.s32.totalorder %s21, 0
        %s742 = scalar_select %p741, %s21, 0
        %s743 = sadd.s32 %s742, %s740
        %s744 = smul.addr %s743, 4
        %s745 = scalar_lea.vmem %s3, %s744
      $region44: #{transformer_forward.26} parent=39 // pred_fallthru
        _
    $region40: #{transformer_forward.26} parent=5 // pred_fallthru
      _
  $region6: #{transformer_forward.26} parent=0 // loop_footer
    %s13 = sadd.s32 1, %s9
  $region7: #{transformer_forward.26} parent=0 // loop_footer_branch
    %8 = sbr.rel target = $region3
  $region8: #{transformer_forward.26} parent=0 // loop_exit
    _

// kernel: transformer_forward.36
$region0: #{transformer_forward.36}
  #allocation0 [shape = 'u32[]', space=smem, size = 0x4, offset = 0x4, fixed_abs, tag = 'smem constant byte address 0x4 - core index']
  #allocation1 [shape = 'u32[144,128]{1,0:T(1,128)}', space=vmem, size = 0x12000, scoped, tag = 'internal scratch']
  #allocation2 [shape = 'f32[16,32]{1,0:T(8,128)}', space=vmem, size = 0x2000, scoped, tag = 'scratch operand']
  %s0 = inlined_call_operand.vmem [shape: bf16[16,32], index: 0, kind: input, shape index: {}]
  %s1 = inlined_call_operand.vmem [shape: bf16[32,32], index: 1, kind: input, shape index: {}]
  %s2 = inlined_call_operand.vmem [shape: f32[1,32], index: 2, kind: input, shape index: {}]
  %s3 = inlined_call_operand.vmem [shape: bf16[16,32], index: 3, kind: output, shape index: {}]
  %s4 = sld [smem:[#allocation0]]
  $region30: #{transformer_forward.36} parent=0
    _
  %s6 = ssub.s32 1, %s4
  %s7 = scalar_select 0, %s6, %s4
  // Predicated region
  $region2: #{transformer_forward.36} parent=0 // pred_check
    _
  $region3: #{transformer_forward.36} parent=0 // pred_check_branch
    %9 = sbr.rel (0) target = $region5
  $region4: #{transformer_forward.36} parent=0 // pred_region
    _
  $region5: #{transformer_forward.36} parent=0 // pred_fallthru
    _
  // Predicated region
  $region6: #{transformer_forward.36} parent=0 // pred_check
    _
  $region7: #{transformer_forward.36} parent=0 // pred_check_branch
    %11 = sbr.rel (0) target = $region9
  $region8: #{transformer_forward.36} parent=0 // pred_region
    _
  $region9: #{transformer_forward.36} parent=0 // pred_fallthru
    _
  // Predicated region
  $region10: #{transformer_forward.36} parent=0 // pred_check
    _
  $region11: #{transformer_forward.36} parent=0 // pred_check_branch
    %13 = sbr.rel (0) target = $region13
  $region12: #{transformer_forward.36} parent=0 // pred_region
    _
  $region13: #{transformer_forward.36} parent=0 // pred_fallthru
    _
  %p15 = scmp.eq.s32.totalorder 0, 0
  // Predicated region
  $region14: #{transformer_forward.36} parent=0 // pred_check
    %p16 = pneg %p15
  $region15: #{transformer_forward.36} parent=0 // pred_check_branch
    %18 = sbr.rel (%p16) target = $region17
  $region16: #{transformer_forward.36} parent=0 // pred_region
    %vm19 = vcmask 261120
    %20 = vst.msk [vmem:[#allocation2] sm:$0xff] %vm19, 0.0
    %21 = vst.msk [vmem:[#allocation2 + $0x8] sm:$0xff] %vm19, 0.0
  $region17: #{transformer_forward.36} parent=0 // pred_fallthru
    _
  %v22 = vld [vmem:[#allocation2] sm:$0xff]
  %v23 = vld [vmem:[#allocation2 + $0x8] sm:$0xff]
  %v24 = vld [vmem:[%s0] sm:$0xf]
  %v25 = vld [vmem:[%s0 + $0x4] sm:$0xf]
  %v26 = vld [vmem:[%s1] sm:$0xf]
  %v27 = vld [vmem:[%s1 + $0x4] sm:$0xf]
  %v28 = vld [vmem:[%s1 + $0x8] sm:$0xf]
  %v29 = vld [vmem:[%s1 + $0xc] sm:$0xf]
  %v32 = vunpack.c.l.b16 %v24
  %v33 = vunpack.c.l.b16 %v25
  %v34 = vpack.c.b16 %v33, %v32
  %v39 = vunpack.c.l.b16 %v26
  %v40 = vunpack.c.l.b16 %v27
  %v41 = vunpack.c.l.b16 %v28
  %v42 = vunpack.c.l.b16 %v29
  %v43 = vpack.c.b16 %v40, %v39
  %v44 = vpack.c.b16 %v42, %v41
  %vm47 = vcmask 261120
  %v49 = vsel %vm47, %v34, 0
  %51 = vmatprep.subr.bf16.mxu0 0
  %52 = vmatpush1.bf16.msra.mxu0 %v43
  %53 = vmatprep.subr.bf16.mxu0 0
  %54 = vmatpush1.bf16.msra.mxu0 %v44
  %55 = vmatprep.subr.bf16.mxu0 0
  %56 = vmatpush1.bf16.msra.mxu0 0
  %57 = vmatprep.subr.bf16.mxu0 0
  %58 = vmatpush1.bf16.msra.mxu0 0
  %59 = vmatprep.subr.bf16.mxu0 0
  %60 = vmatpush1.bf16.msra.mxu0 0
  %61 = vmatprep.subr.bf16.mxu0 0
  %62 = vmatpush1.bf16.msra.mxu0 0
  %63 = vmatprep.subr.bf16.mxu0 0
  %64 = vmatpush1.bf16.msra.mxu0 0
  %65 = vmatprep.subr.bf16.mxu0 0
  %66 = vmatpush1.bf16.msra.mxu0 0
  %67 = vmatprep.subr.bf16.mxu0 0
  %68 = vmatpush1.bf16.msra.mxu0 0
  %69 = vmatprep.subr.bf16.mxu0 0
  %70 = vmatpush1.bf16.msra.mxu0 0
  %71 = vmatprep.subr.bf16.mxu0 0
  %72 = vmatpush1.bf16.msra.mxu0 0
  %73 = vmatprep.subr.bf16.mxu0 0
  %74 = vmatpush1.bf16.msra.mxu0 0
  %75 = vmatprep.subr.bf16.mxu0 0
  %76 = vmatpush1.bf16.msra.mxu0 0
  %77 = vmatprep.subr.bf16.mxu0 0
  %78 = vmatpush1.bf16.msra.mxu0 0
  %79 = vmatprep.subr.bf16.mxu0 0
  %80 = vmatpush1.bf16.msra.mxu0 0
  %81 = vmatprep.subr.bf16.mxu0 0
  %82 = vmatpush1.bf16.msra.mxu0 0
  %83 = vmatprep.mubr.bf16.mxu0 0
  %84 = vmatmul.mubr.bf16.gmra.mrb[0].mxu0 %v49
  %v85 = vpop.f32.mrb[0].mxu0
  %v86 = vadd.f32 0.0, %v85
  %v87 = vpop.f32.mrb[0].mxu0
  %v88 = vpop.f32.mrb[0].mxu0
  %v89 = vadd.f32 0.0, %v88
  %v90 = vpop.f32.mrb[0].mxu0
  %91 = vdwg.mxu0
  %v92 = vadd.f32 %v22, %v86
  %v93 = vadd.f32 %v23, %v89
  %94 = vst.msk [vmem:[#allocation2] sm:$0xff] %vm47, %v92
  %95 = vst.msk [vmem:[#allocation2 + $0x8] sm:$0xff] %vm47, %v93
  // Predicated region
  $region18: #{transformer_forward.36} parent=0 // pred_check
    %p96 = pneg %p15
  $region19: #{transformer_forward.36} parent=0 // pred_check_branch
    %98 = sbr.rel (%p96) target = $region21
  $region20: #{transformer_forward.36} parent=0 // pred_region
    %v99 = vld [vmem:[#allocation2] sm:$0xff]
    %v100 = vld [vmem:[#allocation2 + $0x8] sm:$0xff]
    %v101 = vld [vmem:[%s2] sm:$0x1]
    %v103 = vlaneseq
    %v104 = vshrl.u32 %v103, 7
    %v105 = vsub.s32 0, %v104
    %v106 = vrot.slane %v101, %v105
    %v108 = vadd.f32 %v99, %v106
    %v109 = vadd.f32 %v100, %v106
    %v110 = vpack.c.bf16 %v109, %v108
    %v112 = vunpack.c.l.b16 %v110
    %v113 = vunpack.c.h.b16 %v110
    %v114 = vpack.c.b16 %v112, %v112
    %v115 = vpack.c.b16 %v113, %v113
    %vm118 = vcmask 257024
    %119 = vst.msk [vmem:[%s3] sm:$0xf] %vm118, %v114
    %120 = vst.msk [vmem:[%s3 + $0x4] sm:$0xf] %vm118, %v115
  $region21: #{transformer_forward.36} parent=0 // pred_fallthru
    _
  // Predicated region
  $region22: #{transformer_forward.36} parent=0 // pred_check
    _
  $region23: #{transformer_forward.36} parent=0 // pred_check_branch
    %122 = sbr.rel (0) target = $region25
  $region24: #{transformer_forward.36} parent=0 // pred_region
    _
  $region25: #{transformer_forward.36} parent=0 // pred_fallthru
    _
  // Predicated region
  $region26: #{transformer_forward.36} parent=0 // pred_check
    _
  $region27: #{transformer_forward.36} parent=0 // pred_check_branch
    %124 = sbr.rel (0) target = $region29
  $region28: #{transformer_forward.36} parent=0 // pred_region
    _
  $region29: #{transformer_forward.36} parent=0 // pred_fallthru
    _

// kernel: transformer_forward.49
$region0: #{transformer_forward.49}
  #allocation0 [shape = 'u32[]', space=smem, size = 0x4, offset = 0x4, fixed_abs, tag = 'smem constant byte address 0x4 - core index']
  #allocation1 [shape = 'u32[144,128]{1,0:T(1,128)}', space=vmem, size = 0x12000, scoped, tag = 'internal scratch']
  #allocation2 [shape = 'f32[16,64]{1,0:T(8,128)}', space=vmem, size = 0x2000, scoped, tag = 'scratch operand']
  %s0 = inlined_call_operand.vmem [shape: bf16[16,32], index: 0, kind: input, shape index: {}]
  %s1 = inlined_call_operand.vmem [shape: bf16[32,64], index: 1, kind: input, shape index: {}]
  %s2 = inlined_call_operand.vmem [shape: f32[1,64], index: 2, kind: input, shape index: {}]
  %s3 = inlined_call_operand.hbm [shape: f32[16,64], index: 3, kind: output, shape index: {}]
  %s4 = sld [smem:[#allocation0]]
  $region30: #{transformer_forward.49} parent=0
    _
  %s6 = ssub.s32 1, %s4
  %s7 = scalar_select 0, %s6, %s4
  $region1: #{transformer_forward.49} parent=0
    #allocation3 [shape = 'u8[8192]{0}', space=vmem, size = 0x2000, scoped, tag = 'output window, operand 0, single buffered']
    #allocation4 [shape = 's32[1]{0}', space=sflag, size = 0x4, scoped, tag = 'scoped memory for transformer_forward.49']
    %8 = vsyncpa [#allocation4], 0
    // Predicated region
    $region2: #{transformer_forward.49} parent=1 // pred_check
      _
    $region3: #{transformer_forward.49} parent=1 // pred_check_branch
      %10 = sbr.rel (0) target = $region5
    $region4: #{transformer_forward.49} parent=1 // pred_region
      _
    $region5: #{transformer_forward.49} parent=1 // pred_fallthru
      _
    // Predicated region
    $region6: #{transformer_forward.49} parent=1 // pred_check
      _
    $region7: #{transformer_forward.49} parent=1 // pred_check_branch
      %12 = sbr.rel (0) target = $region9
    $region8: #{transformer_forward.49} parent=1 // pred_region
      _
    $region9: #{transformer_forward.49} parent=1 // pred_fallthru
      _
    // Predicated region
    $region10: #{transformer_forward.49} parent=1 // pred_check
      _
    $region11: #{transformer_forward.49} parent=1 // pred_check_branch
      %14 = sbr.rel (0) target = $region13
    $region12: #{transformer_forward.49} parent=1 // pred_region
      _
    $region13: #{transformer_forward.49} parent=1 // pred_fallthru
      _
    %p16 = scmp.eq.s32.totalorder 0, 0
    // Predicated region
    $region14: #{transformer_forward.49} parent=1 // pred_check
      %p17 = pneg %p16
    $region15: #{transformer_forward.49} parent=1 // pred_check_branch
      %19 = sbr.rel (%p17) target = $region17
    $region16: #{transformer_forward.49} parent=1 // pred_region
      %vm20 = vcmask 523264
      %21 = vst.msk [vmem:[#allocation2] sm:$0xff] %vm20, 0.0
      %22 = vst.msk [vmem:[#allocation2 + $0x8] sm:$0xff] %vm20, 0.0
    $region17: #{transformer_forward.49} parent=1 // pred_fallthru
      _
    %v23 = vld [vmem:[#allocation2] sm:$0xff]
    %v24 = vld [vmem:[#allocation2 + $0x8] sm:$0xff]
    %v25 = vld [vmem:[%s0] sm:$0xf]
    %v26 = vld [vmem:[%s0 + $0x4] sm:$0xf]
    %v27 = vld [vmem:[%s1] sm:$0xf]
    %v28 = vld [vmem:[%s1 + $0x4] sm:$0xf]
    %v29 = vld [vmem:[%s1 + $0x8] sm:$0xf]
    %v30 = vld [vmem:[%s1 + $0xc] sm:$0xf]
    %v33 = vunpack.c.l.b16 %v25
    %v34 = vunpack.c.l.b16 %v26
    %v35 = vpack.c.b16 %v34, %v33
    %v40 = vunpack.c.l.b16 %v27
    %v41 = vunpack.c.l.b16 %v28
    %v42 = vunpack.c.l.b16 %v29
    %v43 = vunpack.c.l.b16 %v30
    %v44 = vpack.c.b16 %v41, %v40
    %v45 = vpack.c.b16 %v43, %v42
    %vm48 = vcmask 261120
    %v50 = vsel %vm48, %v35, 0
    %52 = vmatprep.subr.bf16.mxu0 0
    %53 = vmatpush1.bf16.msra.mxu0 %v44
    %54 = vmatprep.subr.bf16.mxu0 0
    %55 = vmatpush1.bf16.msra.mxu0 %v45
    %56 = vmatprep.subr.bf16.mxu0 0
    %57 = vmatpush1.bf16.msra.mxu0 0
    %58 = vmatprep.subr.bf16.mxu0 0
    %59 = vmatpush1.bf16.msra.mxu0 0
    %60 = vmatprep.subr.bf16.mxu0 0
    %61 = vmatpush1.bf16.msra.mxu0 0
    %62 = vmatprep.subr.bf16.mxu0 0
    %63 = vmatpush1.bf16.msra.mxu0 0
    %64 = vmatprep.subr.bf16.mxu0 0
    %65 = vmatpush1.bf16.msra.mxu0 0
    %66 = vmatprep.subr.bf16.mxu0 0
    %67 = vmatpush1.bf16.msra.mxu0 0
    %68 = vmatprep.subr.bf16.mxu0 0
    %69 = vmatpush1.bf16.msra.mxu0 0
    %70 = vmatprep.subr.bf16.mxu0 0
    %71 = vmatpush1.bf16.msra.mxu0 0
    %72 = vmatprep.subr.bf16.mxu0 0
    %73 = vmatpush1.bf16.msra.mxu0 0
    %74 = vmatprep.subr.bf16.mxu0 0
    %75 = vmatpush1.bf16.msra.mxu0 0
    %76 = vmatprep.subr.bf16.mxu0 0
    %77 = vmatpush1.bf16.msra.mxu0 0
    %78 = vmatprep.subr.bf16.mxu0 0
    %79 = vmatpush1.bf16.msra.mxu0 0
    %80 = vmatprep.subr.bf16.mxu0 0
    %81 = vmatpush1.bf16.msra.mxu0 0
    %82 = vmatprep.subr.bf16.mxu0 0
    %83 = vmatpush1.bf16.msra.mxu0 0
    %84 = vmatprep.mubr.bf16.mxu0 0
    %85 = vmatmul.mubr.bf16.gmra.mrb[0].mxu0 %v50
    %v86 = vpop.f32.mrb[0].mxu0
    %v87 = vadd.f32 0.0, %v86
    %v88 = vpop.f32.mrb[0].mxu0
    %v89 = vpop.f32.mrb[0].mxu0
    %v90 = vadd.f32 0.0, %v89
    %v91 = vpop.f32.mrb[0].mxu0
    %92 = vdwg.mxu0
    %v93 = vadd.f32 %v23, %v87
    %v94 = vadd.f32 %v24, %v90
    %vm95 = vcmask 523264
    %96 = vst.msk [vmem:[#allocation2] sm:$0xff] %vm95, %v93
    %97 = vst.msk [vmem:[#allocation2 + $0x8] sm:$0xff] %vm95, %v94
    // Predicated region
    $region18: #{transformer_forward.49} parent=1 // pred_check
      %p98 = pneg %p16
    $region19: #{transformer_forward.49} parent=1 // pred_check_branch
      %100 = sbr.rel (%p98) target = $region21
    $region20: #{transformer_forward.49} parent=1 // pred_region
      %v101 = vld [vmem:[#allocation2] sm:$0xff]
      %v102 = vld [vmem:[#allocation2 + $0x8] sm:$0xff]
      %v103 = vld [vmem:[%s2] sm:$0x1]
      %v105 = vlaneseq
      %v106 = vshrl.u32 %v105, 7
      %v107 = vsub.s32 0, %v106
      %v108 = vrot.slane %v103, %v107
      %v110 = vadd.f32 %v101, %v108
      %v111 = vadd.f32 %v102, %v108
      %112 = vst.msk [vmem:[#allocation3] sm:$0xff] %vm95, %v110
      %113 = vst.msk [vmem:[#allocation3 + $0x8] sm:$0xff] %vm95, %v111
    $region21: #{transformer_forward.49} parent=1 // pred_fallthru
      _
    // Predicated region
    $region22: #{transformer_forward.49} parent=1 // pred_check
      _
    $region23: #{transformer_forward.49} parent=1 // pred_check_branch
      %115 = sbr.rel (0) target = $region25
    $region24: #{transformer_forward.49} parent=1 // pred_region
      %s117 = ssub.s32 256, 256
      %118 = vsyncadd [#allocation4], %s117
      %s119 = sshll.u32 [#allocation3], 4
      %s120 = int_to_ptr.vmem [resolvable:$true] %s119
      %125 = dma.vmem_to_hbm [thread:$0]  %s120, 256, %s3, [#allocation4], 128, 128, 8
    $region25: #{transformer_forward.49} parent=1 // pred_fallthru
      _
    // Predicated region
    $region26: #{transformer_forward.49} parent=1 // pred_check
      _
    $region27: #{transformer_forward.49} parent=1 // pred_check_branch
      %127 = sbr.rel (0) target = $region29
    $region28: #{transformer_forward.49} parent=1 // pred_region
      %128 = dma.done [#allocation4], 256
    $region29: #{transformer_forward.49} parent=1 // pred_fallthru
      _
    %129 = vsyncpa [#allocation4], 1

// kernel: transformer_forward.37
$region0: #{transformer_forward.37}
  #allocation0 [shape = 'u32[]', space=smem, size = 0x4, offset = 0x4, fixed_abs, tag = 'smem constant byte address 0x4 - core index']
  #allocation1 [shape = 'u32[144,128]{1,0:T(1,128)}', space=vmem, size = 0x12000, scoped, tag = 'internal scratch']
  #allocation2 [shape = 'f32[16,64]{1,0:T(8,128)}', space=vmem, size = 0x2000, scoped, tag = 'scratch operand']
  %s0 = inlined_call_operand.vmem [shape: bf16[16,32], index: 0, kind: input, shape index: {}]
  %s1 = inlined_call_operand.vmem [shape: bf16[32,64], index: 1, kind: input, shape index: {}]
  %s2 = inlined_call_operand.vmem [shape: f32[1,64], index: 2, kind: input, shape index: {}]
  %s3 = inlined_call_operand.vmem [shape: bf16[16,64], index: 3, kind: output, shape index: {}]
  %s4 = sld [smem:[#allocation0]]
  $region30: #{transformer_forward.37} parent=0
    _
  %s6 = ssub.s32 1, %s4
  %s7 = scalar_select 0, %s6, %s4
  // Predicated region
  $region2: #{transformer_forward.37} parent=0 // pred_check
    _
  $region3: #{transformer_forward.37} parent=0 // pred_check_branch
    %9 = sbr.rel (0) target = $region5
  $region4: #{transformer_forward.37} parent=0 // pred_region
    _
  $region5: #{transformer_forward.37} parent=0 // pred_fallthru
    _
  // Predicated region
  $region6: #{transformer_forward.37} parent=0 // pred_check
    _
  $region7: #{transformer_forward.37} parent=0 // pred_check_branch
    %11 = sbr.rel (0) target = $region9
  $region8: #{transformer_forward.37} parent=0 // pred_region
    _
  $region9: #{transformer_forward.37} parent=0 // pred_fallthru
    _
  // Predicated region
  $region10: #{transformer_forward.37} parent=0 // pred_check
    _
  $region11: #{transformer_forward.37} parent=0 // pred_check_branch
    %13 = sbr.rel (0) target = $region13
  $region12: #{transformer_forward.37} parent=0 // pred_region
    _
  $region13: #{transformer_forward.37} parent=0 // pred_fallthru
    _
  %p15 = scmp.eq.s32.totalorder 0, 0
  // Predicated region
  $region14: #{transformer_forward.37} parent=0 // pred_check
    %p16 = pneg %p15
  $region15: #{transformer_forward.37} parent=0 // pred_check_branch
    %18 = sbr.rel (%p16) target = $region17
  $region16: #{transformer_forward.37} parent=0 // pred_region
    %vm19 = vcmask 523264
    %20 = vst.msk [vmem:[#allocation2] sm:$0xff] %vm19, 0.0
    %21 = vst.msk [vmem:[#allocation2 + $0x8] sm:$0xff] %vm19, 0.0
  $region17: #{transformer_forward.37} parent=0 // pred_fallthru
    _
  %v22 = vld [vmem:[#allocation2] sm:$0xff]
  %v23 = vld [vmem:[#allocation2 + $0x8] sm:$0xff]
  %v24 = vld [vmem:[%s0] sm:$0xf]
  %v25 = vld [vmem:[%s0 + $0x4] sm:$0xf]
  %v26 = vld [vmem:[%s1] sm:$0xf]
  %v27 = vld [vmem:[%s1 + $0x4] sm:$0xf]
  %v28 = vld [vmem:[%s1 + $0x8] sm:$0xf]
  %v29 = vld [vmem:[%s1 + $0xc] sm:$0xf]
  %v32 = vunpack.c.l.b16 %v24
  %v33 = vunpack.c.l.b16 %v25
  %v34 = vpack.c.b16 %v33, %v32
  %v39 = vunpack.c.l.b16 %v26
  %v40 = vunpack.c.l.b16 %v27
  %v41 = vunpack.c.l.b16 %v28
  %v42 = vunpack.c.l.b16 %v29
  %v43 = vpack.c.b16 %v40, %v39
  %v44 = vpack.c.b16 %v42, %v41
  %vm47 = vcmask 261120
  %v49 = vsel %vm47, %v34, 0
  %51 = vmatprep.subr.bf16.mxu0 0
  %52 = vmatpush1.bf16.msra.mxu0 %v43
  %53 = vmatprep.subr.bf16.mxu0 0
  %54 = vmatpush1.bf16.msra.mxu0 %v44
  %55 = vmatprep.subr.bf16.mxu0 0
  %56 = vmatpush1.bf16.msra.mxu0 0
  %57 = vmatprep.subr.bf16.mxu0 0
  %58 = vmatpush1.bf16.msra.mxu0 0
  %59 = vmatprep.subr.bf16.mxu0 0
  %60 = vmatpush1.bf16.msra.mxu0 0
  %61 = vmatprep.subr.bf16.mxu0 0
  %62 = vmatpush1.bf16.msra.mxu0 0
  %63 = vmatprep.subr.bf16.mxu0 0
  %64 = vmatpush1.bf16.msra.mxu0 0
  %65 = vmatprep.subr.bf16.mxu0 0
  %66 = vmatpush1.bf16.msra.mxu0 0
  %67 = vmatprep.subr.bf16.mxu0 0
  %68 = vmatpush1.bf16.msra.mxu0 0
  %69 = vmatprep.subr.bf16.mxu0 0
  %70 = vmatpush1.bf16.msra.mxu0 0
  %71 = vmatprep.subr.bf16.mxu0 0
  %72 = vmatpush1.bf16.msra.mxu0 0
  %73 = vmatprep.subr.bf16.mxu0 0
  %74 = vmatpush1.bf16.msra.mxu0 0
  %75 = vmatprep.subr.bf16.mxu0 0
  %76 = vmatpush1.bf16.msra.mxu0 0
  %77 = vmatprep.subr.bf16.mxu0 0
  %78 = vmatpush1.bf16.msra.mxu0 0
  %79 = vmatprep.subr.bf16.mxu0 0
  %80 = vmatpush1.bf16.msra.mxu0 0
  %81 = vmatprep.subr.bf16.mxu0 0
  %82 = vmatpush1.bf16.msra.mxu0 0
  %83 = vmatprep.mubr.bf16.mxu0 0
  %84 = vmatmul.mubr.bf16.gmra.mrb[0].mxu0 %v49
  %v85 = vpop.f32.mrb[0].mxu0
  %v86 = vadd.f32 0.0, %v85
  %v87 = vpop.f32.mrb[0].mxu0
  %v88 = vpop.f32.mrb[0].mxu0
  %v89 = vadd.f32 0.0, %v88
  %v90 = vpop.f32.mrb[0].mxu0
  %91 = vdwg.mxu0
  %v92 = vadd.f32 %v22, %v86
  %v93 = vadd.f32 %v23, %v89
  %vm94 = vcmask 523264
  %95 = vst.msk [vmem:[#allocation2] sm:$0xff] %vm94, %v92
  %96 = vst.msk [vmem:[#allocation2 + $0x8] sm:$0xff] %vm94, %v93
  // Predicated region
  $region18: #{transformer_forward.37} parent=0 // pred_check
    %p97 = pneg %p15
  $region19: #{transformer_forward.37} parent=0 // pred_check_branch
    %99 = sbr.rel (%p97) target = $region21
  $region20: #{transformer_forward.37} parent=0 // pred_region
    %v100 = vld [vmem:[#allocation2] sm:$0xff]
    %v101 = vld [vmem:[#allocation2 + $0x8] sm:$0xff]
    %v102 = vld [vmem:[%s2] sm:$0x1]
    %v104 = vlaneseq
    %v105 = vshrl.u32 %v104, 7
    %v106 = vsub.s32 0, %v105
    %v107 = vrot.slane %v102, %v106
    %v109 = vadd.f32 %v100, %v107
    %v110 = vadd.f32 %v101, %v107
    %v111 = vpack.c.bf16 %v110, %v109
    %v113 = vunpack.c.l.b16 %v111
    %v114 = vunpack.c.h.b16 %v111
    %v115 = vpack.c.b16 %v113, %v113
    %v116 = vpack.c.b16 %v114, %v114
    %vm119 = vcmask 519168
    %120 = vst.msk [vmem:[%s3] sm:$0xf] %vm119, %v115
    %121 = vst.msk [vmem:[%s3 + $0x4] sm:$0xf] %vm119, %v116
  $region21: #{transformer_forward.37} parent=0 // pred_fallthru
    _
  // Predicated region
  $region22: #{transformer_forward.37} parent=0 // pred_check
    _
  $region23: #{transformer_forward.37} parent=0 // pred_check_branch
    %123 = sbr.rel (0) target = $region25
  $region24: #{transformer_forward.37} parent=0 // pred_region
    _
  $region25: #{transformer_forward.37} parent=0 // pred_fallthru
    _
  // Predicated region
  $region26: #{transformer_forward.37} parent=0 // pred_check
    _
  $region27: #{transformer_forward.37} parent=0 // pred_check_branch
    %125 = sbr.rel (0) target = $region29
  $region28: #{transformer_forward.37} parent=0 // pred_region
    _
  $region29: #{transformer_forward.37} parent=0 // pred_fallthru
    _

</llo_original>
